<compile_context>
chip_gen: v7x
topology: tpu7x:2x2x1
jax: 0.10.0
libtpu: 0.0.40
codegen_flags: <defaults>
</compile_context>

<pallas_src>
import functools

import jax
import jax.numpy as jnp
from jax.experimental import pallas as pl
from jax.experimental.pallas import tpu as pltpu


# ---------------------------------------------------------------------------
# Layer configuration (matches the PyTorch nn.Sequential)
# ---------------------------------------------------------------------------
_LAYER_CFG = [  # (c_in, c_out, kernel, pad)
    (8, 32, 5, 1),
    (32, 64, 5, 1),
    (64, 128, 3, 1),
    (128, 256, 3, 1),
]
_BN_EPS = 1e-5


def _round_up(v, m):
    return (v + m - 1) // m * m


# ---------------------------------------------------------------------------
# Fused kernel: whole network in one invocation, all state in VMEM
# ---------------------------------------------------------------------------
def _fused_disc_kernel(meta, x_ref, ctx_ref, wp_ref, misc_ref, out_ref, *act_refs):
    """Fused discriminator forward.

    Refs:
      x_ref    : (B, Lx, 8)
      ctx_ref  : (B, Lc, 8)
      wp_ref   : (R, Cmax) packed conv weights, layer i at rows
                 [w_off_i, w_off_i + K_i*c_in_i), cols [0, c_out_i)
      misc_ref : (2*n_layers + 2, Cmax): rows 2i/2i+1 = folded-BN scale/shift of
                 layer i; row 2n = head weight; row 2n+1 col 0 = head bias
      out_ref  : (B, 1)
      act_refs : per-layer padded-activation VMEM scratch, flat (B*Lpp, c_in)
    """
    f32 = jnp.float32
    B = meta["B"]
    Lc = meta["Lc"]
    Lx = meta["Lx"]
    Lpp = meta["Lpp"]                 # per-batch padded slab length (multiple of 8)
    layers = meta["layers"]           # (K, c_in, c_out, w_off, pad, l_out) per layer
    n_layers = len(layers)
    n = B * Lpp                       # flattened rows (multiple of 8)

    # ---- stage torch.cat((context, x), dim=1) into layer-0 padded scratch ----
    a0 = act_refs[0]
    a0[...] = jnp.zeros(a0.shape, f32)            # tiny (n, 8); provides pad zeros
    pad0 = layers[0][4]
    for b in range(B):                            # B tiny & static -> unrolled
        base = b * Lpp + pad0
        a0[base:base + Lc, :] = ctx_ref[b].astype(f32)
        a0[base + Lc:base + Lc + Lx, :] = x_ref[b].astype(f32)

    # Only the first `pad` rows of the later buffers need explicit zeros; all
    # other pad rows are produced by the masked, shifted inter-layer stores.
    for li in range(1, n_layers):
        padn = layers[li][4]
        if padn > 0:
            act_refs[li][0:padn, :] = jnp.zeros((padn, act_refs[li].shape[1]), f32)

    # Row index inside each batch item's Lpp-row slab (masks invalid tail rows).
    pos = jnp.concatenate(
        [jax.lax.broadcasted_iota(jnp.int32, (Lpp, 1), 0)] * B, axis=0)   # (n, 1)

    for li, (K, c_in, c_out, w_off, pad, l_out) in enumerate(layers):
        # ---- im2col: (n, K*c_in) built from ONE aligned full-slab load -------
        xf = act_refs[li][...]                                        # (n, c_in)
        xz = jnp.concatenate([xf, jnp.zeros((K - 1, c_in), f32)], axis=0)
        im2 = jnp.concatenate([xz[k:k + n, :] for k in range(K)], axis=-1)

        # ---- one MXU matmul per layer (batch folded into M) ------------------
        w = wp_ref[w_off:w_off + K * c_in, 0:c_out]                   # (K*c_in, c_out)
        y = jnp.dot(im2, w, preferred_element_type=f32)               # (n, c_out)

        # ---- folded-BN scale/shift + ReLU (hoisted, one load per layer) ------
        s = misc_ref[2 * li:2 * li + 1, 0:c_out]                      # (1, c_out)
        t = misc_ref[2 * li + 1:2 * li + 2, 0:c_out]                  # (1, c_out)
        y = jnp.maximum(y * s + t, 0.0)

        valid = pos < l_out                                           # (n, 1)
        ym = jnp.where(valid, y, 0.0)

        if li + 1 < n_layers:
            # Uniform shift: y row r -> next-scratch row r + pad_next.  Since all
            # slabs share Lpp, this single masked store also writes the zero pad
            # rows of every batch item (except batch-0's pre-zeroed head pad).
            pad_next = layers[li + 1][4]
            act_refs[li + 1][pad_next:n, :] = ym[0:n - pad_next, :]
        else:
            # AdaptiveAvgPool1d(1) + Linear(256, 1): VPU/XLU, ONE (B, 1) store.
            hw = misc_ref[2 * n_layers:2 * n_layers + 1, 0:c_out]     # (1, c_out)
            hb = misc_ref[2 * n_layers + 1:2 * n_layers + 2, 0:1]     # (1, 1)
            pooled = jnp.concatenate(
                [jnp.sum(ym[b * Lpp:(b + 1) * Lpp, :], axis=0, keepdims=True)
                 for b in range(B)], axis=0) * (1.0 / l_out)          # (B, c_out)
            logits = jnp.sum(pooled * hw, axis=-1, keepdims=True) + hb
            out_ref[...] = logits.astype(out_ref.dtype)


# ---------------------------------------------------------------------------
# Host-side parameter packing (done once; cuts 14 tiny DMAs to 2 buffers)
# ---------------------------------------------------------------------------
def pack_params(params, head_w, head_b):
    n_layers = len(params)
    c_max = _round_up(max(max(int(p["w"].shape[2]) for p in params),
                          int(head_w.shape[0])), 128)

    # Conv weights: stacked along rows at 8-aligned offsets, cols padded to c_max.
    offs, off = [], 0
    for p in params:
        K, c_in, _ = p["w"].shape
        off = _round_up(off, 8)
        offs.append(off)
        off += K * c_in
    wp = jnp.zeros((_round_up(off, 8), c_max), jnp.float32)
    for p, o in zip(params, offs):
        K, c_in, c_out = p["w"].shape
        wp = wp.at[o:o + K * c_in, 0:c_out].set(
            p["w"].reshape(K * c_in, c_out).astype(jnp.float32))

    # BN scale/shift per layer + head weight/bias, one row each.
    misc = jnp.zeros((2 * n_layers + 2, c_max), jnp.float32)
    for i, p in enumerate(params):
        c_out = int(p["w"].shape[2])
        misc = misc.at[2 * i, 0:c_out].set(p["scale"].astype(jnp.float32))
        misc = misc.at[2 * i + 1, 0:c_out].set(p["shift"].astype(jnp.float32))
    misc = misc.at[2 * n_layers, 0:int(head_w.shape[0])].set(
        head_w.reshape(-1).astype(jnp.float32))
    misc = misc.at[2 * n_layers + 1, 0].set(jnp.asarray(head_b).reshape(-1)[0])

    layer_static = tuple(
        (int(p["w"].shape[0]), int(p["w"].shape[1]), int(p["w"].shape[2]),
         int(o), int(p["pad"])) for p, o in zip(params, offs))
    return wp, misc, layer_static


# ---------------------------------------------------------------------------
# Wrapper: single pallas_call for the whole forward
# ---------------------------------------------------------------------------
def discriminator_forward(x, context, packed):
    """x: (B, Lx, 8), context: (B, Lc, 8) -> (B, 1)."""
    wp, misc, layer_static = packed
    B, Lx, _ = x.shape
    Lc = context.shape[1]

    layers, lp_list = [], []
    flops = 0
    L = Lc + Lx
    for (K, c_in, c_out, w_off, pad) in layer_static:
        Lp = L + 2 * pad
        l_out = Lp - K + 1
        if l_out <= 0:
            raise ValueError(f"sequence too short for kernel_size={K}, pad={pad}")
        lp_list.append(Lp)
        layers.append((K, c_in, c_out, w_off, pad, l_out))
        flops += 2 * B * l_out * K * c_in * c_out
        L = l_out
    flops += 2 * B * layer_static[-1][2]

    Lpp = _round_up(max(lp_list), 8)       # shared padded slab length
    n = B * Lpp

    meta = dict(B=B, Lc=Lc, Lx=Lx, Lpp=Lpp, layers=tuple(layers))
    scratch_shapes = [pltpu.VMEM((n, c_in), jnp.float32)
                      for (_, c_in, _, _, _, _) in layers]

    args = (x.astype(jnp.float32), context.astype(jnp.float32), wp, misc)
    bytes_accessed = sum(int(a.size) * a.dtype.itemsize for a in args) + B * 4

    return pl.pallas_call(
        functools.partial(_fused_disc_kernel, meta),
        out_shape=jax.ShapeDtypeStruct((B, 1), jnp.float32),
        scratch_shapes=scratch_shapes,
        cost_estimate=pl.CostEstimate(
            flops=flops, transcendentals=0, bytes_accessed=bytes_accessed),
    )(*args)


# ---------------------------------------------------------------------------
# Parameter construction (deterministic, synthetic)
# ---------------------------------------------------------------------------
def init_params(key):
    params = []
    for (c_in, c_out, K, pad) in _LAYER_CFG:
        key, kw, kb, kg, kbe, km, kv = jax.random.split(key, 7)
        w = jax.random.normal(kw, (K, c_in, c_out), jnp.float32) * 0.1
        bias = jax.random.normal(kb, (c_out,), jnp.float32) * 0.1
        gamma = 1.0 + 0.1 * jax.random.normal(kg, (c_out,), jnp.float32)
        beta = 0.1 * jax.random.normal(kbe, (c_out,), jnp.float32)
        r_mean = 0.1 * jax.random.normal(km, (c_out,), jnp.float32)
        r_var = jax.random.uniform(kv, (c_out,), jnp.float32, 0.5, 1.5)
        # Fold conv bias + eval-mode BatchNorm into per-channel scale/shift:
        #   BN(conv + bias) = scale * conv + shift
        scale = gamma / jnp.sqrt(r_var + _BN_EPS)
        shift = beta + (bias - r_mean) * scale
        params.append({"w": w, "scale": scale, "shift": shift, "pad": pad})

    key, kw, kb = jax.random.split(key, 3)
    head_w = jax.random.normal(kw, (256, 1), jnp.float32) * 0.05
    head_b = jax.random.normal(kb, (1,), jnp.float32) * 0.05
    return params, head_w, head_b


# ---------------------------------------------------------------------------
# Pure-JAX reference
# ---------------------------------------------------------------------------
def _ref_conv_bn_relu(x, w, scale, shift, pad):
    xp = jnp.pad(x, ((0, 0), (pad, pad), (0, 0)))
    K = w.shape[0]
    l_out = xp.shape[1] - K + 1
    acc = 0.0
    for k in range(K):
        acc = acc + jnp.einsum("blc,cd->bld", xp[:, k:k + l_out, :], w[k])
    return jnp.maximum(acc * scale[None, None, :] + shift[None, None, :], 0.0)


def reference_forward(x, context, params, head_w, head_b):
    h = jnp.concatenate([context, x], axis=1)
    for p in params:
        h = _ref_conv_bn_relu(h, p["w"], p["scale"], p["shift"], p["pad"])
    pooled = jnp.mean(h, axis=1)
    return pooled @ head_w + head_b[None, :]


# ---------------------------------------------------------------------------
if __name__ == "__main__":
    key = jax.random.PRNGKey(0)
    key, kx, kc, kp = jax.random.split(key, 4)

    batch = 2
    s_params = 8          # n_strokes_params (== conv in_channels = 8)
    seq_length = 8
    context_length = 4

    x = jax.random.normal(kx, (batch, seq_length, s_params), jnp.float32)
    context = jax.random.normal(kc, (batch, context_length, s_params), jnp.float32)

    params, head_w, head_b = init_params(kp)
    packed = pack_params(params, head_w, head_b)

    out = discriminator_forward(x, context, packed)
    out = jax.block_until_ready(out)

    ref = reference_forward(x, context, params, head_w, head_b)
    assert out.shape == (batch, 1), out.shape
    assert jnp.allclose(out, ref, rtol=1e-4, atol=1e-4), (out, ref)

    print("KERNEL_OK")
</pallas_src>

<mosaic_0001>
module attributes {stable_mosaic.version = 11 : i64} {
  func.func @_fused_disc_kernel(%arg0: memref<2x8x8xf32, #tpu.memory_space<vmem>>, %arg1: memref<2x4x8xf32, #tpu.memory_space<vmem>>, %arg2: memref<776x256xf32, #tpu.memory_space<vmem>>, %arg3: memref<10x256xf32, #tpu.memory_space<vmem>>, %arg4: memref<2x1xf32, #tpu.memory_space<vmem>>, %arg5: memref<32x8xf32, #tpu.memory_space<vmem>>, %arg6: memref<32x32xf32, #tpu.memory_space<vmem>>, %arg7: memref<32x64xf32, #tpu.memory_space<vmem>>, %arg8: memref<32x128xf32, #tpu.memory_space<vmem>>) attributes {dimension_semantics = [], scalar_prefetch = 0 : i64, scratch_operands = 4 : i64, tpu.core_type = #tpu.core_type<tc>} {
    %cst = arith.constant 0.000000e+00 : f32
    %0 = vector.broadcast %cst : f32 to vector<32x8xf32>
    %c0 = arith.constant 0 : index
    %c0_0 = arith.constant 0 : index
    %1 = vector.load %arg5[%c0, %c0_0] : memref<32x8xf32, #tpu.memory_space<vmem>>, vector<32x8xf32>
    tpu.vector_store %arg5[%c0, %c0_0], %0 {strides = array<i32>} : memref<32x8xf32, #tpu.memory_space<vmem>>, vector<32x8xf32>,
    %c0_1 = arith.constant 0 : index
    %c0_2 = arith.constant 0 : index
    %c0_3 = arith.constant 0 : index
    %2 = vector.load %arg1[%c0_1, %c0_2, %c0_3] : memref<2x4x8xf32, #tpu.memory_space<vmem>>, vector<1x4x8xf32>
    %3 = vector.shape_cast %2 : vector<1x4x8xf32> to vector<4x8xf32>
    %c1 = arith.constant 1 : index
    %c0_4 = arith.constant 0 : index
    %4 = vector.load %arg5[%c1, %c0_4] : memref<32x8xf32, #tpu.memory_space<vmem>>, vector<4x8xf32>
    tpu.vector_store %arg5[%c1, %c0_4], %3 {strides = array<i32>} : memref<32x8xf32, #tpu.memory_space<vmem>>, vector<4x8xf32>,
    %c0_5 = arith.constant 0 : index
    %c0_6 = arith.constant 0 : index
    %c0_7 = arith.constant 0 : index
    %5 = vector.load %arg0[%c0_5, %c0_6, %c0_7] : memref<2x8x8xf32, #tpu.memory_space<vmem>>, vector<1x8x8xf32>
    %6 = vector.shape_cast %5 : vector<1x8x8xf32> to vector<8x8xf32>
    %c5 = arith.constant 5 : index
    %c0_8 = arith.constant 0 : index
    %7 = vector.load %arg5[%c5, %c0_8] : memref<32x8xf32, #tpu.memory_space<vmem>>, vector<8x8xf32>
    tpu.vector_store %arg5[%c5, %c0_8], %6 {strides = array<i32>} : memref<32x8xf32, #tpu.memory_space<vmem>>, vector<8x8xf32>,
    %c1_9 = arith.constant 1 : index
    %c0_10 = arith.constant 0 : index
    %c0_11 = arith.constant 0 : index
    %8 = vector.load %arg1[%c1_9, %c0_10, %c0_11] : memref<2x4x8xf32, #tpu.memory_space<vmem>>, vector<1x4x8xf32>
    %9 = vector.shape_cast %8 : vector<1x4x8xf32> to vector<4x8xf32>
    %c17 = arith.constant 17 : index
    %c0_12 = arith.constant 0 : index
    %10 = vector.load %arg5[%c17, %c0_12] : memref<32x8xf32, #tpu.memory_space<vmem>>, vector<4x8xf32>
    tpu.vector_store %arg5[%c17, %c0_12], %9 {strides = array<i32>} : memref<32x8xf32, #tpu.memory_space<vmem>>, vector<4x8xf32>,
    %c1_13 = arith.constant 1 : index
    %c0_14 = arith.constant 0 : index
    %c0_15 = arith.constant 0 : index
    %11 = vector.load %arg0[%c1_13, %c0_14, %c0_15] : memref<2x8x8xf32, #tpu.memory_space<vmem>>, vector<1x8x8xf32>
    %12 = vector.shape_cast %11 : vector<1x8x8xf32> to vector<8x8xf32>
    %c21 = arith.constant 21 : index
    %c0_16 = arith.constant 0 : index
    %13 = vector.load %arg5[%c21, %c0_16] : memref<32x8xf32, #tpu.memory_space<vmem>>, vector<8x8xf32>
    tpu.vector_store %arg5[%c21, %c0_16], %12 {strides = array<i32>} : memref<32x8xf32, #tpu.memory_space<vmem>>, vector<8x8xf32>,
    %cst_17 = arith.constant 0.000000e+00 : f32
    %14 = vector.broadcast %cst_17 : f32 to vector<1x32xf32>
    %c0_18 = arith.constant 0 : index
    %c0_19 = arith.constant 0 : index
    %15 = vector.load %arg6[%c0_18, %c0_19] : memref<32x32xf32, #tpu.memory_space<vmem>>, vector<1x32xf32>
    tpu.vector_store %arg6[%c0_18, %c0_19], %14 {strides = array<i32>} : memref<32x32xf32, #tpu.memory_space<vmem>>, vector<1x32xf32>,
    %cst_20 = arith.constant 0.000000e+00 : f32
    %16 = vector.broadcast %cst_20 : f32 to vector<1x64xf32>
    %c0_21 = arith.constant 0 : index
    %c0_22 = arith.constant 0 : index
    %17 = vector.load %arg7[%c0_21, %c0_22] : memref<32x64xf32, #tpu.memory_space<vmem>>, vector<1x64xf32>
    tpu.vector_store %arg7[%c0_21, %c0_22], %16 {strides = array<i32>} : memref<32x64xf32, #tpu.memory_space<vmem>>, vector<1x64xf32>,
    %cst_23 = arith.constant 0.000000e+00 : f32
    %18 = vector.broadcast %cst_23 : f32 to vector<1x128xf32>
    %c0_24 = arith.constant 0 : index
    %c0_25 = arith.constant 0 : index
    %19 = vector.load %arg8[%c0_24, %c0_25] : memref<32x128xf32, #tpu.memory_space<vmem>>, vector<1x128xf32>
    tpu.vector_store %arg8[%c0_24, %c0_25], %18 {strides = array<i32>} : memref<32x128xf32, #tpu.memory_space<vmem>>, vector<1x128xf32>,
    %20 = tpu.iota {dimensions = array<i32: 0>} : vector<16x1xi32>
    %21 = tpu.concatenate %20, %20 in 0 : vector<16x1xi32>, vector<16x1xi32> -> vector<32x1xi32>
    %c0_26 = arith.constant 0 : index
    %c0_27 = arith.constant 0 : index
    %22 = vector.load %arg5[%c0_26, %c0_27] : memref<32x8xf32, #tpu.memory_space<vmem>>, vector<32x8xf32>
    %cst_28 = arith.constant 0.000000e+00 : f32
    %23 = vector.broadcast %cst_28 : f32 to vector<4x8xf32>
    %24 = tpu.concatenate %22, %23 in 0 : vector<32x8xf32>, vector<4x8xf32> -> vector<36x8xf32>
    %25 = vector.extract_strided_slice %24 {offsets = [0, 0], sizes = [32, 8], strides = [1, 1]} : vector<36x8xf32> to vector<32x8xf32>
    %26 = vector.extract_strided_slice %24 {offsets = [1, 0], sizes = [32, 8], strides = [1, 1]} : vector<36x8xf32> to vector<32x8xf32>
    %27 = vector.extract_strided_slice %24 {offsets = [2, 0], sizes = [32, 8], strides = [1, 1]} : vector<36x8xf32> to vector<32x8xf32>
    %28 = vector.extract_strided_slice %24 {offsets = [3, 0], sizes = [32, 8], strides = [1, 1]} : vector<36x8xf32> to vector<32x8xf32>
    %29 = vector.extract_strided_slice %24 {offsets = [4, 0], sizes = [32, 8], strides = [1, 1]} : vector<36x8xf32> to vector<32x8xf32>
    %30 = tpu.concatenate %25, %26, %27, %28, %29 in 1 : vector<32x8xf32>, vector<32x8xf32>, vector<32x8xf32>, vector<32x8xf32>, vector<32x8xf32> -> vector<32x40xf32>
    %c0_29 = arith.constant 0 : index
    %c0_30 = arith.constant 0 : index
    %31 = vector.load %arg2[%c0_29, %c0_30] : memref<776x256xf32, #tpu.memory_space<vmem>>, vector<40x32xf32>
    %cst_31 = arith.constant dense<0.000000e+00> : vector<32x32xf32>
    %32 = tpu.matmul %30, %31, %cst_31 {dimension_numbers = #tpu.dot_dimension_numbers<[1], [0], [0], [1], [0, 0, 1, 1], [], []>} : vector<32x40xf32>, vector<40x32xf32>, vector<32x32xf32> -> vector<32x32xf32>
    %c0_32 = arith.constant 0 : index
    %c0_33 = arith.constant 0 : index
    %33 = vector.load %arg3[%c0_32, %c0_33] : memref<10x256xf32, #tpu.memory_space<vmem>>, vector<1x32xf32>
    %c1_34 = arith.constant 1 : index
    %c0_35 = arith.constant 0 : index
    %34 = vector.load %arg3[%c1_34, %c0_35] : memref<10x256xf32, #tpu.memory_space<vmem>>, vector<1x32xf32>
    %35 = vector.broadcast %33 : vector<1x32xf32> to vector<32x32xf32>
    %36 = arith.mulf %32, %35 : vector<32x32xf32>
    %37 = vector.broadcast %34 : vector<1x32xf32> to vector<32x32xf32>
    %38 = arith.addf %36, %37 : vector<32x32xf32>
    %cst_36 = arith.constant 0.000000e+00 : f32
    %39 = vector.broadcast %cst_36 : f32 to vector<32x32xf32>
    %40 = arith.maximumf %38, %39 : vector<32x32xf32>
    %c10_i32 = arith.constant 10 : i32
    %41 = vector.broadcast %c10_i32 : i32 to vector<32x1xi32>
    %42 = arith.cmpi slt, %21, %41 : vector<32x1xi32>
    %cst_37 = arith.constant 0.000000e+00 : f32
    %43 = vector.shape_cast %42 : vector<32x1xi1> to vector<32x1xi1>
    %44 = vector.broadcast %43 : vector<32x1xi1> to vector<32x32xi1>
    %45 = vector.broadcast %cst_37 : f32 to vector<32x32xf32>
    %46 = arith.select %44, %40, %45 : vector<32x32xi1>, vector<32x32xf32>
    %47 = vector.extract_strided_slice %46 {offsets = [0, 0], sizes = [31, 32], strides = [1, 1]} : vector<32x32xf32> to vector<31x32xf32>
    %c1_38 = arith.constant 1 : index
    %c0_39 = arith.constant 0 : index
    %48 = vector.load %arg6[%c1_38, %c0_39] : memref<32x32xf32, #tpu.memory_space<vmem>>, vector<31x32xf32>
    tpu.vector_store %arg6[%c1_38, %c0_39], %47 {strides = array<i32>} : memref<32x32xf32, #tpu.memory_space<vmem>>, vector<31x32xf32>,
    %c0_40 = arith.constant 0 : index
    %c0_41 = arith.constant 0 : index
    %49 = vector.load %arg6[%c0_40, %c0_41] : memref<32x32xf32, #tpu.memory_space<vmem>>, vector<32x32xf32>
    %cst_42 = arith.constant 0.000000e+00 : f32
    %50 = vector.broadcast %cst_42 : f32 to vector<4x32xf32>
    %51 = tpu.concatenate %49, %50 in 0 : vector<32x32xf32>, vector<4x32xf32> -> vector<36x32xf32>
    %52 = vector.extract_strided_slice %51 {offsets = [0, 0], sizes = [32, 32], strides = [1, 1]} : vector<36x32xf32> to vector<32x32xf32>
    %53 = vector.extract_strided_slice %51 {offsets = [1, 0], sizes = [32, 32], strides = [1, 1]} : vector<36x32xf32> to vector<32x32xf32>
    %54 = vector.extract_strided_slice %51 {offsets = [2, 0], sizes = [32, 32], strides = [1, 1]} : vector<36x32xf32> to vector<32x32xf32>
    %55 = vector.extract_strided_slice %51 {offsets = [3, 0], sizes = [32, 32], strides = [1, 1]} : vector<36x32xf32> to vector<32x32xf32>
    %56 = vector.extract_strided_slice %51 {offsets = [4, 0], sizes = [32, 32], strides = [1, 1]} : vector<36x32xf32> to vector<32x32xf32>
    %57 = tpu.concatenate %52, %53, %54, %55, %56 in 1 : vector<32x32xf32>, vector<32x32xf32>, vector<32x32xf32>, vector<32x32xf32>, vector<32x32xf32> -> vector<32x160xf32>
    %c40 = arith.constant 40 : index
    %c0_43 = arith.constant 0 : index
    %58 = vector.load %arg2[%c40, %c0_43] : memref<776x256xf32, #tpu.memory_space<vmem>>, vector<160x64xf32>
    %cst_44 = arith.constant dense<0.000000e+00> : vector<32x64xf32>
    %59 = tpu.matmul %57, %58, %cst_44 {dimension_numbers = #tpu.dot_dimension_numbers<[1], [0], [0], [1], [0, 0, 1, 1], [], []>} : vector<32x160xf32>, vector<160x64xf32>, vector<32x64xf32> -> vector<32x64xf32>
    %c2 = arith.constant 2 : index
    %c0_45 = arith.constant 0 : index
    %60 = vector.load %arg3[%c2, %c0_45] : memref<10x256xf32, #tpu.memory_space<vmem>>, vector<1x64xf32>
    %c3 = arith.constant 3 : index
    %c0_46 = arith.constant 0 : index
    %61 = vector.load %arg3[%c3, %c0_46] : memref<10x256xf32, #tpu.memory_space<vmem>>, vector<1x64xf32>
    %62 = vector.broadcast %60 : vector<1x64xf32> to vector<32x64xf32>
    %63 = arith.mulf %59, %62 : vector<32x64xf32>
    %64 = vector.broadcast %61 : vector<1x64xf32> to vector<32x64xf32>
    %65 = arith.addf %63, %64 : vector<32x64xf32>
    %cst_47 = arith.constant 0.000000e+00 : f32
    %66 = vector.broadcast %cst_47 : f32 to vector<32x64xf32>
    %67 = arith.maximumf %65, %66 : vector<32x64xf32>
    %c8_i32 = arith.constant 8 : i32
    %68 = vector.broadcast %c8_i32 : i32 to vector<32x1xi32>
    %69 = arith.cmpi slt, %21, %68 : vector<32x1xi32>
    %cst_48 = arith.constant 0.000000e+00 : f32
    %70 = vector.shape_cast %69 : vector<32x1xi1> to vector<32x1xi1>
    %71 = vector.broadcast %70 : vector<32x1xi1> to vector<32x64xi1>
    %72 = vector.broadcast %cst_48 : f32 to vector<32x64xf32>
    %73 = arith.select %71, %67, %72 : vector<32x64xi1>, vector<32x64xf32>
    %74 = vector.extract_strided_slice %73 {offsets = [0, 0], sizes = [31, 64], strides = [1, 1]} : vector<32x64xf32> to vector<31x64xf32>
    %c1_49 = arith.constant 1 : index
    %c0_50 = arith.constant 0 : index
    %75 = vector.load %arg7[%c1_49, %c0_50] : memref<32x64xf32, #tpu.memory_space<vmem>>, vector<31x64xf32>
    tpu.vector_store %arg7[%c1_49, %c0_50], %74 {strides = array<i32>} : memref<32x64xf32, #tpu.memory_space<vmem>>, vector<31x64xf32>,
    %c0_51 = arith.constant 0 : index
    %c0_52 = arith.constant 0 : index
    %76 = vector.load %arg7[%c0_51, %c0_52] : memref<32x64xf32, #tpu.memory_space<vmem>>, vector<32x64xf32>
    %cst_53 = arith.constant 0.000000e+00 : f32
    %77 = vector.broadcast %cst_53 : f32 to vector<2x64xf32>
    %78 = tpu.concatenate %76, %77 in 0 : vector<32x64xf32>, vector<2x64xf32> -> vector<34x64xf32>
    %79 = vector.extract_strided_slice %78 {offsets = [0, 0], sizes = [32, 64], strides = [1, 1]} : vector<34x64xf32> to vector<32x64xf32>
    %80 = vector.extract_strided_slice %78 {offsets = [1, 0], sizes = [32, 64], strides = [1, 1]} : vector<34x64xf32> to vector<32x64xf32>
    %81 = vector.extract_strided_slice %78 {offsets = [2, 0], sizes = [32, 64], strides = [1, 1]} : vector<34x64xf32> to vector<32x64xf32>
    %82 = tpu.concatenate %79, %80, %81 in 1 : vector<32x64xf32>, vector<32x64xf32>, vector<32x64xf32> -> vector<32x192xf32>
    %c200 = arith.constant 200 : index
    %c0_54 = arith.constant 0 : index
    %83 = vector.load %arg2[%c200, %c0_54] : memref<776x256xf32, #tpu.memory_space<vmem>>, vector<192x128xf32>
    %cst_55 = arith.constant dense<0.000000e+00> : vector<32x128xf32>
    %84 = tpu.matmul %82, %83, %cst_55 {dimension_numbers = #tpu.dot_dimension_numbers<[1], [0], [0], [1], [0, 0, 1, 1], [], []>} : vector<32x192xf32>, vector<192x128xf32>, vector<32x128xf32> -> vector<32x128xf32>
    %c4 = arith.constant 4 : index
    %c0_56 = arith.constant 0 : index
    %85 = vector.load %arg3[%c4, %c0_56] : memref<10x256xf32, #tpu.memory_space<vmem>>, vector<1x128xf32>
    %c5_57 = arith.constant 5 : index
    %c0_58 = arith.constant 0 : index
    %86 = vector.load %arg3[%c5_57, %c0_58] : memref<10x256xf32, #tpu.memory_space<vmem>>, vector<1x128xf32>
    %87 = vector.broadcast %85 : vector<1x128xf32> to vector<32x128xf32>
    %88 = arith.mulf %84, %87 : vector<32x128xf32>
    %89 = vector.broadcast %86 : vector<1x128xf32> to vector<32x128xf32>
    %90 = arith.addf %88, %89 : vector<32x128xf32>
    %cst_59 = arith.constant 0.000000e+00 : f32
    %91 = vector.broadcast %cst_59 : f32 to vector<32x128xf32>
    %92 = arith.maximumf %90, %91 : vector<32x128xf32>
    %c8_i32_60 = arith.constant 8 : i32
    %93 = vector.broadcast %c8_i32_60 : i32 to vector<32x1xi32>
    %94 = arith.cmpi slt, %21, %93 : vector<32x1xi32>
    %cst_61 = arith.constant 0.000000e+00 : f32
    %95 = vector.shape_cast %94 : vector<32x1xi1> to vector<32x1xi1>
    %96 = vector.broadcast %95 : vector<32x1xi1> to vector<32x128xi1>
    %97 = vector.broadcast %cst_61 : f32 to vector<32x128xf32>
    %98 = arith.select %96, %92, %97 : vector<32x128xi1>, vector<32x128xf32>
    %99 = vector.extract_strided_slice %98 {offsets = [0, 0], sizes = [31, 128], strides = [1, 1]} : vector<32x128xf32> to vector<31x128xf32>
    %c1_62 = arith.constant 1 : index
    %c0_63 = arith.constant 0 : index
    %100 = vector.load %arg8[%c1_62, %c0_63] : memref<32x128xf32, #tpu.memory_space<vmem>>, vector<31x128xf32>
    tpu.vector_store %arg8[%c1_62, %c0_63], %99 {strides = array<i32>} : memref<32x128xf32, #tpu.memory_space<vmem>>, vector<31x128xf32>,
    %c0_64 = arith.constant 0 : index
    %c0_65 = arith.constant 0 : index
    %101 = vector.load %arg8[%c0_64, %c0_65] : memref<32x128xf32, #tpu.memory_space<vmem>>, vector<32x128xf32>
    %cst_66 = arith.constant 0.000000e+00 : f32
    %102 = vector.broadcast %cst_66 : f32 to vector<2x128xf32>
    %103 = tpu.concatenate %101, %102 in 0 : vector<32x128xf32>, vector<2x128xf32> -> vector<34x128xf32>
    %104 = vector.extract_strided_slice %103 {offsets = [0, 0], sizes = [32, 128], strides = [1, 1]} : vector<34x128xf32> to vector<32x128xf32>
    %105 = vector.extract_strided_slice %103 {offsets = [1, 0], sizes = [32, 128], strides = [1, 1]} : vector<34x128xf32> to vector<32x128xf32>
    %106 = vector.extract_strided_slice %103 {offsets = [2, 0], sizes = [32, 128], strides = [1, 1]} : vector<34x128xf32> to vector<32x128xf32>
    %107 = tpu.concatenate %104, %105, %106 in 1 : vector<32x128xf32>, vector<32x128xf32>, vector<32x128xf32> -> vector<32x384xf32>
    %c392 = arith.constant 392 : index
    %c0_67 = arith.constant 0 : index
    %108 = vector.load %arg2[%c392, %c0_67] : memref<776x256xf32, #tpu.memory_space<vmem>>, vector<384x256xf32>
    %cst_68 = arith.constant dense<0.000000e+00> : vector<32x256xf32>
    %109 = tpu.matmul %107, %108, %cst_68 {dimension_numbers = #tpu.dot_dimension_numbers<[1], [0], [0], [1], [0, 0, 1, 1], [], []>} : vector<32x384xf32>, vector<384x256xf32>, vector<32x256xf32> -> vector<32x256xf32>
    %c6 = arith.constant 6 : index
    %c0_69 = arith.constant 0 : index
    %110 = vector.load %arg3[%c6, %c0_69] : memref<10x256xf32, #tpu.memory_space<vmem>>, vector<1x256xf32>
    %c7 = arith.constant 7 : index
    %c0_70 = arith.constant 0 : index
    %111 = vector.load %arg3[%c7, %c0_70] : memref<10x256xf32, #tpu.memory_space<vmem>>, vector<1x256xf32>
    %112 = vector.broadcast %110 : vector<1x256xf32> to vector<32x256xf32>
    %113 = arith.mulf %109, %112 : vector<32x256xf32>
    %114 = vector.broadcast %111 : vector<1x256xf32> to vector<32x256xf32>
    %115 = arith.addf %113, %114 : vector<32x256xf32>
    %cst_71 = arith.constant 0.000000e+00 : f32
    %116 = vector.broadcast %cst_71 : f32 to vector<32x256xf32>
    %117 = arith.maximumf %115, %116 : vector<32x256xf32>
    %c8_i32_72 = arith.constant 8 : i32
    %118 = vector.broadcast %c8_i32_72 : i32 to vector<32x1xi32>
    %119 = arith.cmpi slt, %21, %118 : vector<32x1xi32>
    %cst_73 = arith.constant 0.000000e+00 : f32
    %120 = vector.shape_cast %119 : vector<32x1xi1> to vector<32x1xi1>
    %121 = vector.broadcast %120 : vector<32x1xi1> to vector<32x256xi1>
    %122 = vector.broadcast %cst_73 : f32 to vector<32x256xf32>
    %123 = arith.select %121, %117, %122 : vector<32x256xi1>, vector<32x256xf32>
    %c8 = arith.constant 8 : index
    %c0_74 = arith.constant 0 : index
    %124 = vector.load %arg3[%c8, %c0_74] : memref<10x256xf32, #tpu.memory_space<vmem>>, vector<1x256xf32>
    %c9 = arith.constant 9 : index
    %c0_75 = arith.constant 0 : index
    %125 = vector.load %arg3[%c9, %c0_75] : memref<10x256xf32, #tpu.memory_space<vmem>>, vector<1x1xf32>
    %126 = vector.extract_strided_slice %123 {offsets = [0, 0], sizes = [16, 256], strides = [1, 1]} : vector<32x256xf32> to vector<16x256xf32>
    %cst_76 = arith.constant dense<0.000000e+00> : vector<256xf32>
    %127 = vector.multi_reduction <add>, %126, %cst_76 [0] : vector<16x256xf32> to vector<256xf32>
    %128 = vector.shape_cast %127 : vector<256xf32> to vector<1x256xf32>
    %129 = vector.extract_strided_slice %123 {offsets = [16, 0], sizes = [16, 256], strides = [1, 1]} : vector<32x256xf32> to vector<16x256xf32>
    %cst_77 = arith.constant dense<0.000000e+00> : vector<256xf32>
    %130 = vector.multi_reduction <add>, %129, %cst_77 [0] : vector<16x256xf32> to vector<256xf32>
    %131 = vector.shape_cast %130 : vector<256xf32> to vector<1x256xf32>
    %132 = tpu.concatenate %128, %131 in 0 : vector<1x256xf32>, vector<1x256xf32> -> vector<2x256xf32>
    %cst_78 = arith.constant 1.250000e-01 : f32
    %133 = vector.broadcast %cst_78 : f32 to vector<2x256xf32>
    %134 = arith.mulf %132, %133 : vector<2x256xf32>
    %135 = vector.broadcast %124 : vector<1x256xf32> to vector<2x256xf32>
    %136 = arith.mulf %134, %135 : vector<2x256xf32>
    %cst_79 = arith.constant dense<0.000000e+00> : vector<2xf32>
    %137 = vector.multi_reduction <add>, %136, %cst_79 [1] : vector<2x256xf32> to vector<2xf32>
    %138 = vector.shape_cast %137 : vector<2xf32> to vector<2x1xf32>
    %139 = vector.broadcast %125 : vector<1x1xf32> to vector<2x1xf32>
    %140 = arith.addf %138, %139 : vector<2x1xf32>
    %c0_80 = arith.constant 0 : index
    %c0_81 = arith.constant 0 : index
    %141 = vector.load %arg4[%c0_80, %c0_81] : memref<2x1xf32, #tpu.memory_space<vmem>>, vector<2x1xf32>
    tpu.vector_store %arg4[%c0_80, %c0_81], %140 {strides = array<i32>} : memref<2x1xf32, #tpu.memory_space<vmem>>, vector<2x1xf32>,
    return
  }
}

</mosaic_0001>

<llo_original>
// kernel: tpu_custom_call.1
$region0: #{tpu_custom_call.1}
  #allocation0 [shape = 'u32[]', space=smem, size = 0x4, offset = 0x4, fixed_abs, tag = 'smem constant byte address 0x4 - core index']
  #allocation1 [shape = 'u32[144,128]{1,0:T(1,128)}', space=vmem, size = 0x12000, scoped, tag = 'internal scratch']
  #allocation2 [shape = 'f32[32,8]{1,0:T(8,128)}', space=vmem, size = 0x4000, scoped, tag = 'scratch operand']
  #allocation3 [shape = 'f32[32,32]{1,0:T(8,128)}', space=vmem, size = 0x4000, scoped, tag = 'scratch operand']
  #allocation4 [shape = 'f32[32,64]{1,0:T(8,128)}', space=vmem, size = 0x4000, scoped, tag = 'scratch operand']
  #allocation5 [shape = 'f32[32,128]{1,0:T(8,128)}', space=vmem, size = 0x4000, scoped, tag = 'scratch operand']
  %s0 = inlined_call_operand.hbm [shape: f32[2,8,8], index: 0, kind: input, shape index: {}]
  %s1 = inlined_call_operand.hbm [shape: f32[2,4,8], index: 1, kind: input, shape index: {}]
  %s2 = inlined_call_operand.hbm [shape: f32[776,256], index: 2, kind: input, shape index: {}]
  %s3 = inlined_call_operand.hbm [shape: f32[10,256], index: 3, kind: input, shape index: {}]
  %s4 = inlined_call_operand.vmem [shape: f32[2,1], index: 4, kind: output, shape index: {}]
  %s5 = sld [smem:[#allocation0]]
  $region42: #{tpu_custom_call.1} parent=0
    _
  %s7 = ssub.s32 1, %s5
  %s8 = scalar_select 0, %s7, %s5
  $region1: #{tpu_custom_call.1} parent=0
    #allocation6 [shape = 'u8[8192]{0}', space=vmem, size = 0x2000, scoped, tag = 'input window, operand 0, single buffered']
    #allocation7 [shape = 's32[1]{0}', space=sflag, size = 0x4, scoped, tag = 'scoped memory for tpu_custom_call.1']
    #allocation8 [shape = 'u8[4096]{0}', space=vmem, size = 0x1000, scoped, tag = 'input window, operand 1, single buffered']
    #allocation9 [shape = 's32[1]{0}', space=sflag, size = 0x4, scoped, tag = 'scoped memory for tpu_custom_call.1']
    #allocation10 [shape = 'u8[794624]{0}', space=vmem, size = 0xc2000, scoped, tag = 'input window, operand 2, single buffered']
    #allocation11 [shape = 'u8[16384]{0}', space=vmem, size = 0x4000, scoped, tag = 'input window, operand 3, single buffered']
    #allocation12 [shape = 's32[1]{0}', space=sflag, size = 0x4, scoped, tag = 'scoped memory for tpu_custom_call.1']
    %9 = vsyncpa [#allocation7], 0
    %10 = vsyncpa [#allocation9], 0
    %11 = vsyncpa [#allocation12], 0
    // Predicated region
    $region2: #{tpu_custom_call.1} parent=1 // pred_check
      _
    $region3: #{tpu_custom_call.1} parent=1 // pred_check_branch
      %13 = sbr.rel (0) target = $region5
    $region4: #{tpu_custom_call.1} parent=1 // pred_region
      %s15 = ssub.s32 256, 256
      %16 = vsyncadd [#allocation7], %s15
      %s17 = sshll.u32 [#allocation6], 4
      %s18 = int_to_ptr.vmem [resolvable:$true] %s17
      %23 = dma.hbm_to_vmem [thread:$0]  %s0, 256, %s18, [#allocation7], 128, 128, 8
    $region5: #{tpu_custom_call.1} parent=1 // pred_fallthru
      _
    // Predicated region
    $region6: #{tpu_custom_call.1} parent=1 // pred_check
      _
    $region7: #{tpu_custom_call.1} parent=1 // pred_check_branch
      %25 = sbr.rel (0) target = $region9
    $region8: #{tpu_custom_call.1} parent=1 // pred_region
      %s27 = ssub.s32 128, 128
      %28 = vsyncadd [#allocation9], %s27
      %s29 = sshll.u32 [#allocation8], 4
      %s30 = int_to_ptr.vmem [resolvable:$true] %s29
      %35 = dma.hbm_to_vmem [thread:$0]  %s1, 128, %s30, [#allocation9], 64, 64, 4
    $region9: #{tpu_custom_call.1} parent=1 // pred_fallthru
      _
    // Predicated region
    $region10: #{tpu_custom_call.1} parent=1 // pred_check
      _
    $region11: #{tpu_custom_call.1} parent=1 // pred_check_branch
      %37 = sbr.rel (0) target = $region13
    $region12: #{tpu_custom_call.1} parent=1 // pred_region
      %s39 = ssub.s32 24832, 24832
      %40 = vsyncadd [#allocation9], %s39
      %s41 = sshll.u32 [#allocation10], 4
      %s42 = int_to_ptr.vmem [resolvable:$true] %s41
      %47 = dma.hbm_to_vmem [thread:$0]  %s2, 24832, %s42, [#allocation9], 256, 256, 16
    $region13: #{tpu_custom_call.1} parent=1 // pred_fallthru
      _
    // Predicated region
    $region14: #{tpu_custom_call.1} parent=1 // pred_check
      _
    $region15: #{tpu_custom_call.1} parent=1 // pred_check_branch
      %49 = sbr.rel (0) target = $region17
    $region16: #{tpu_custom_call.1} parent=1 // pred_region
      %s51 = ssub.s32 512, 512
      %52 = vsyncadd [#allocation12], %s51
      %s53 = sshll.u32 [#allocation11], 4
      %s54 = int_to_ptr.vmem [resolvable:$true] %s53
      %59 = dma.hbm_to_vmem [thread:$0]  %s3, 512, %s54, [#allocation12], 256, 256, 16
    $region17: #{tpu_custom_call.1} parent=1 // pred_fallthru
      _
    // Predicated region
    $region18: #{tpu_custom_call.1} parent=1 // pred_check
      _
    $region19: #{tpu_custom_call.1} parent=1 // pred_check_branch
      %61 = sbr.rel (0) target = $region21
    $region20: #{tpu_custom_call.1} parent=1 // pred_region
      %62 = dma.done [#allocation7], 256
    $region21: #{tpu_custom_call.1} parent=1 // pred_fallthru
      _
    // Predicated region
    $region22: #{tpu_custom_call.1} parent=1 // pred_check
      _
    $region23: #{tpu_custom_call.1} parent=1 // pred_check_branch
      %64 = sbr.rel (0) target = $region25
    $region24: #{tpu_custom_call.1} parent=1 // pred_region
      %65 = dma.done [#allocation9], 128
    $region25: #{tpu_custom_call.1} parent=1 // pred_fallthru
      _
    // Predicated region
    $region26: #{tpu_custom_call.1} parent=1 // pred_check
      _
    $region27: #{tpu_custom_call.1} parent=1 // pred_check_branch
      %67 = sbr.rel (0) target = $region29
    $region28: #{tpu_custom_call.1} parent=1 // pred_region
      %68 = dma.done [#allocation9], 24832
    $region29: #{tpu_custom_call.1} parent=1 // pred_fallthru
      _
    // Predicated region
    $region30: #{tpu_custom_call.1} parent=1 // pred_check
      _
    $region31: #{tpu_custom_call.1} parent=1 // pred_check_branch
      %70 = sbr.rel (0) target = $region33
    $region32: #{tpu_custom_call.1} parent=1 // pred_region
      %71 = dma.done [#allocation12], 512
    $region33: #{tpu_custom_call.1} parent=1 // pred_fallthru
      _
    %vm72 = vcmask 64512
    %73 = vst.msk [vmem:[#allocation2] sm:$0xff] %vm72, 0.0
    %74 = vst.msk [vmem:[#allocation2 + $0x8] sm:$0xff] %vm72, 0.0
    %75 = vst.msk [vmem:[#allocation2 + $0x10] sm:$0xff] %vm72, 0.0
    %76 = vst.msk [vmem:[#allocation2 + $0x18] sm:$0xff] %vm72, 0.0
    %v77 = vld [vmem:[#allocation8] sm:$0xf]
    %vm78 = vcmask 60416
    %79 = vst.msk [vmem:[#allocation2 + $0x1] sm:$0xf] %vm78, %v77
    %v80 = vld [vmem:[#allocation6] sm:$0xff]
    %81 = vst.msk [vmem:[#allocation2 + $0x5] sm:$0xff] %vm72, %v80
    %s82 = scalar_lea.vmem [#allocation8], 4
    %v83 = vld [vmem:[%s82] sm:$0xf]
    %84 = vst.msk [vmem:[#allocation2 + $0x11] sm:$0xf] %vm78, %v83
    %s85 = scalar_lea.vmem [#allocation6], 8
    %v86 = vld [vmem:[%s85] sm:$0xff]
    %87 = vst.msk [vmem:[#allocation2 + $0x15] sm:$0xff] %vm72, %v86
    %vm88 = vcmask 253952
    %89 = vst.msk [vmem:[#allocation3] sm:$0x1] %vm88, 0.0
    %vm90 = vcmask 516096
    %91 = vst.msk [vmem:[#allocation4] sm:$0x1] %vm90, 0.0
    %92 = vst [vmem:[#allocation5] sm:$0x1] 0.0
    %v93 = vlaneseq
    %v94 = vshrl.u32 %v93, 7
    %v95 = vadd.s32 %v94, 8
    %v96 = vld [vmem:[#allocation2] sm:$0xff]
    %v97 = vld [vmem:[#allocation2 + $0x8] sm:$0xff]
    %v98 = vld [vmem:[#allocation2 + $0x10] sm:$0xff]
    %v99 = vld [vmem:[#allocation2 + $0x18] sm:$0xff]
    %vm105 = vcmask 1046528
    %v106 = vrot.slane %v96, 1
    %v107 = vrot.slane %v97, 1
    %v108 = vsel %vm105, %v106, %v107
    %v109 = vrot.slane %v98, 1
    %v110 = vsel %vm105, %v107, %v109
    %v111 = vrot.slane %v99, 1
    %v112 = vsel %vm105, %v109, %v111
    %v113 = vrot.slane 0.0, 1
    %v114 = vsel %vm105, %v111, %v113
    %115 = vrot.lane.b32.xlu0 %v108, 8
    %v116 = vpop.permute.xlu0 %115
    %117 = vrot.lane.b32.xlu0 %v110, 8
    %v118 = vpop.permute.xlu0 %117
    %119 = vrot.lane.b32.xlu0 %v112, 8
    %v120 = vpop.permute.xlu0 %119
    %121 = vrot.lane.b32.xlu0 %v114, 8
    %v122 = vpop.permute.xlu0 %121
    %vm127 = vcmask 1045504
    %v128 = vrot.slane %v96, 2
    %v129 = vrot.slane %v97, 2
    %v130 = vsel %vm127, %v128, %v129
    %v131 = vrot.slane %v98, 2
    %v132 = vsel %vm127, %v129, %v131
    %v133 = vrot.slane %v99, 2
    %v134 = vsel %vm127, %v131, %v133
    %v135 = vrot.slane 0.0, 2
    %v136 = vsel %vm127, %v133, %v135
    %137 = vrot.lane.b32.xlu0 %v130, 16
    %v138 = vpop.permute.xlu0 %137
    %139 = vrot.lane.b32.xlu0 %v132, 16
    %v140 = vpop.permute.xlu0 %139
    %141 = vrot.lane.b32.xlu0 %v134, 16
    %v142 = vpop.permute.xlu0 %141
    %143 = vrot.lane.b32.xlu0 %v136, 16
    %v144 = vpop.permute.xlu0 %143
    %vm149 = vcmask 1044480
    %v150 = vrot.slane %v96, 3
    %v151 = vrot.slane %v97, 3
    %v152 = vsel %vm149, %v150, %v151
    %v153 = vrot.slane %v98, 3
    %v154 = vsel %vm149, %v151, %v153
    %v155 = vrot.slane %v99, 3
    %v156 = vsel %vm149, %v153, %v155
    %v157 = vrot.slane 0.0, 3
    %v158 = vsel %vm149, %v155, %v157
    %159 = vrot.lane.b32.xlu0 %v152, 24
    %v160 = vpop.permute.xlu0 %159
    %161 = vrot.lane.b32.xlu0 %v154, 24
    %v162 = vpop.permute.xlu0 %161
    %163 = vrot.lane.b32.xlu0 %v156, 24
    %v164 = vpop.permute.xlu0 %163
    %165 = vrot.lane.b32.xlu0 %v158, 24
    %v166 = vpop.permute.xlu0 %165
    %vm171 = vcmask 1043456
    %v172 = vrot.slane %v96, 4
    %v173 = vrot.slane %v97, 4
    %v174 = vsel %vm171, %v172, %v173
    %v175 = vrot.slane %v98, 4
    %v176 = vsel %vm171, %v173, %v175
    %v177 = vrot.slane %v99, 4
    %v178 = vsel %vm171, %v175, %v177
    %v179 = vrot.slane 0.0, 4
    %v180 = vsel %vm171, %v177, %v179
    %181 = vrot.lane.b32.xlu0 %v174, 32
    %v182 = vpop.permute.xlu0 %181
    %183 = vrot.lane.b32.xlu0 %v176, 32
    %v184 = vpop.permute.xlu0 %183
    %185 = vrot.lane.b32.xlu0 %v178, 32
    %v186 = vpop.permute.xlu0 %185
    %187 = vrot.lane.b32.xlu0 %v180, 32
    %v188 = vpop.permute.xlu0 %187
    %v193 = vsel %vm72, %v96, %v116
    %v194 = vsel %vm72, %v97, %v118
    %v195 = vsel %vm72, %v98, %v120
    %v196 = vsel %vm72, %v99, %v122
    %vm197 = vcmask 130048
    %v198 = vsel %vm197, %v193, %v138
    %v199 = vsel %vm197, %v194, %v140
    %v200 = vsel %vm197, %v195, %v142
    %v201 = vsel %vm197, %v196, %v144
    %vm202 = vcmask 195584
    %v203 = vsel %vm202, %v198, %v160
    %v204 = vsel %vm202, %v199, %v162
    %v205 = vsel %vm202, %v200, %v164
    %v206 = vsel %vm202, %v201, %v166
    %vm207 = vcmask 261120
    %v208 = vsel %vm207, %v203, %v182
    %v209 = vsel %vm207, %v204, %v184
    %v210 = vsel %vm207, %v205, %v186
    %v211 = vsel %vm207, %v206, %v188
    %v212 = vld [vmem:[#allocation10] sm:$0xff]
    %v213 = vld [vmem:[#allocation10 + $0x10] sm:$0xff]
    %v214 = vld [vmem:[#allocation10 + $0x20] sm:$0xff]
    %v215 = vld [vmem:[#allocation10 + $0x30] sm:$0xff]
    %v216 = vld [vmem:[#allocation10 + $0x40] sm:$0xff]
    %vm217 = vcmask 326656
    %v219 = vsel %vm217, %v208, 0
    %v222 = vsel %vm217, %v209, 0
    %v225 = vsel %vm217, %v210, 0
    %v228 = vsel %vm217, %v211, 0
    %230 = vmatprep.subr.mxu0 0.0
    %231 = vmatpush1.msra.mxu0 %v212
    %232 = vmatprep.subr.mxu0 0.0
    %233 = vmatpush1.msra.mxu0 %v213
    %234 = vmatprep.subr.mxu0 0.0
    %235 = vmatpush1.msra.mxu0 %v214
    %236 = vmatprep.subr.mxu0 0.0
    %237 = vmatpush1.msra.mxu0 %v215
    %238 = vmatprep.subr.mxu0 0.0
    %239 = vmatpush1.msra.mxu0 %v216
    %240 = vmatprep.subr.mxu0 0.0
    %241 = vmatpush1.msra.mxu0 0.0
    %242 = vmatprep.subr.mxu0 0.0
    %243 = vmatpush1.msra.mxu0 0.0
    %244 = vmatprep.subr.mxu0 0.0
    %245 = vmatpush1.msra.mxu0 0.0
    %246 = vmatprep.subr.mxu0 0.0
    %247 = vmatpush1.msra.mxu0 0.0
    %248 = vmatprep.subr.mxu0 0.0
    %249 = vmatpush1.msra.mxu0 0.0
    %250 = vmatprep.subr.mxu0 0.0
    %251 = vmatpush1.msra.mxu0 0.0
    %252 = vmatprep.subr.mxu0 0.0
    %253 = vmatpush1.msra.mxu0 0.0
    %254 = vmatprep.subr.mxu0 0.0
    %255 = vmatpush1.msra.mxu0 0.0
    %256 = vmatprep.subr.mxu0 0.0
    %257 = vmatpush1.msra.mxu0 0.0
    %258 = vmatprep.subr.mxu0 0.0
    %259 = vmatpush1.msra.mxu0 0.0
    %260 = vmatprep.subr.mxu0 0.0
    %261 = vmatpush1.msra.mxu0 0.0
    %262 = vmatprep.subr.mxu0 0.0
    %263 = vmatpush1.msra.mxu0 0.0
    %264 = vmatprep.subr.mxu0 0.0
    %265 = vmatpush1.msra.mxu0 0.0
    %266 = vmatprep.subr.mxu0 0.0
    %267 = vmatpush1.msra.mxu0 0.0
    %268 = vmatprep.subr.mxu0 0.0
    %269 = vmatpush1.msra.mxu0 0.0
    %270 = vmatprep.subr.mxu0 0.0
    %271 = vmatpush1.msra.mxu0 0.0
    %272 = vmatprep.subr.mxu0 0.0
    %273 = vmatpush1.msra.mxu0 0.0
    %274 = vmatprep.subr.mxu0 0.0
    %275 = vmatpush1.msra.mxu0 0.0
    %276 = vmatprep.subr.mxu0 0.0
    %277 = vmatpush1.msra.mxu0 0.0
    %278 = vmatprep.subr.mxu0 0.0
    %279 = vmatpush1.msra.mxu0 0.0
    %280 = vmatprep.subr.mxu0 0.0
    %281 = vmatpush1.msra.mxu0 0.0
    %282 = vmatprep.subr.mxu0 0.0
    %283 = vmatpush1.msra.mxu0 0.0
    %284 = vmatprep.subr.mxu0 0.0
    %285 = vmatpush1.msra.mxu0 0.0
    %286 = vmatprep.subr.mxu0 0.0
    %287 = vmatpush1.msra.mxu0 0.0
    %288 = vmatprep.subr.mxu0 0.0
    %289 = vmatpush1.msra.mxu0 0.0
    %290 = vmatprep.subr.mxu0 0.0
    %291 = vmatpush1.msra.mxu0 0.0
    %292 = vmatprep.subr.mxu0 0.0
    %293 = vmatpush1.msra.mxu0 0.0
    %294 = vmatprep.mubr.f32.mxu0 0.0
    %295 = vmatmul.mubr.f32.gmra.mrb[0].mxu0 %v219
    %v296 = vpop.f32.mrb[0].mxu0
    %v297 = vadd.f32 0.0, %v296
    %v298 = vpop.f32.mrb[0].mxu0
    %299 = vmatprep.mubr.f32.mxu0 0.0
    %300 = vmatmul.mubr.f32.gmra.mrb[0].mxu0 %v222
    %v301 = vpop.f32.mrb[0].mxu0
    %v302 = vadd.f32 0.0, %v301
    %v303 = vpop.f32.mrb[0].mxu0
    %304 = vmatprep.mubr.f32.mxu0 0.0
    %305 = vmatmul.mubr.f32.gmra.mrb[0].mxu0 %v225
    %v306 = vpop.f32.mrb[0].mxu0
    %v307 = vadd.f32 0.0, %v306
    %v308 = vpop.f32.mrb[0].mxu0
    %309 = vmatprep.mubr.f32.mxu0 0.0
    %310 = vmatmul.mubr.f32.gmra.mrb[0].mxu0 %v228
    %v311 = vpop.f32.mrb[0].mxu0
    %v312 = vadd.f32 0.0, %v311
    %v313 = vpop.f32.mrb[0].mxu0
    %314 = vdwg.mxu0
    %v315 = vld [vmem:[#allocation11] ss:$0 sm:$0xff]
    %v316 = vld [vmem:[#allocation11 + $0x1] ss:$0 sm:$0xff]
    %v317 = vmul.f32 %v297, %v315
    %v318 = vmul.f32 %v302, %v315
    %v319 = vmul.f32 %v307, %v315
    %v320 = vmul.f32 %v312, %v315
    %v321 = vadd.f32 %v317, %v316
    %v322 = vadd.f32 %v318, %v316
    %v323 = vadd.f32 %v319, %v316
    %v324 = vadd.f32 %v320, %v316
    %v325 = vmax.f32 %v321, 0.0
    %v326 = vmax.f32 %v322, 0.0
    %v327 = vmax.f32 %v323, 0.0
    %v328 = vmax.f32 %v324, 0.0
    %vm329 = vcmp.lt.s32.totalorder %v94, 10
    %vm330 = vcmp.lt.s32.totalorder %v95, 10
    %v331 = vsel %vm329, 1, 0
    %v332 = vsel %vm330, 1, 0
    %333 = vset.pattern.permute.xlu0 0
    %334 = vperm.xlu0 %333, %v331
    %v335 = vpop.permute.xlu0 %334
    %336 = vset.pattern.permute.xlu0 0
    %337 = vperm.xlu0 %336, %v332
    %v338 = vpop.permute.xlu0 %337
    %vm339 = vcmp.eq.s32.totalorder %v335, 1
    %vm340 = vcmp.eq.s32.totalorder %v338, 1
    %v341 = vsel %vm339, %v325, 0.0
    %v342 = vsel %vm340, %v326, 0.0
    %v343 = vsel %vm339, %v327, 0.0
    %v344 = vsel %vm340, %v328, 0.0
    %345 = vst.msk [vmem:[#allocation3 + $0x1] sm:$0xff] %vm207, %v341
    %346 = vst.msk [vmem:[#allocation3 + $0x9] sm:$0xff] %vm207, %v342
    %347 = vst.msk [vmem:[#allocation3 + $0x11] sm:$0xff] %vm207, %v343
    %vm348 = vcmask 260096
    %349 = vst.msk [vmem:[#allocation3 + $0x19] sm:$0x7f] %vm348, %v344
    %v350 = vld [vmem:[#allocation3] sm:$0xff]
    %v351 = vld [vmem:[#allocation3 + $0x8] sm:$0xff]
    %v352 = vld [vmem:[#allocation3 + $0x10] sm:$0xff]
    %v353 = vld [vmem:[#allocation3 + $0x18] sm:$0xff]
    %v358 = vrot.slane %v350, 1
    %v359 = vrot.slane %v351, 1
    %v360 = vsel %vm105, %v358, %v359
    %v361 = vrot.slane %v352, 1
    %v362 = vsel %vm105, %v359, %v361
    %v363 = vrot.slane %v353, 1
    %v364 = vsel %vm105, %v361, %v363
    %v365 = vsel %vm105, %v363, %v113
    %366 = vrot.lane.b32.xlu0 %v360, 32
    %v367 = vpop.permute.xlu0 %366
    %368 = vrot.lane.b32.xlu0 %v362, 32
    %v369 = vpop.permute.xlu0 %368
    %370 = vrot.lane.b32.xlu0 %v364, 32
    %v371 = vpop.permute.xlu0 %370
    %372 = vrot.lane.b32.xlu0 %v365, 32
    %v373 = vpop.permute.xlu0 %372
    %v378 = vrot.slane %v350, 2
    %v379 = vrot.slane %v351, 2
    %v380 = vsel %vm127, %v378, %v379
    %v381 = vrot.slane %v352, 2
    %v382 = vsel %vm127, %v379, %v381
    %v383 = vrot.slane %v353, 2
    %v384 = vsel %vm127, %v381, %v383
    %v385 = vsel %vm127, %v383, %v135
    %386 = vrot.lane.b32.xlu0 %v380, 64
    %v387 = vpop.permute.xlu0 %386
    %388 = vrot.lane.b32.xlu0 %v382, 64
    %v389 = vpop.permute.xlu0 %388
    %390 = vrot.lane.b32.xlu0 %v384, 64
    %v391 = vpop.permute.xlu0 %390
    %392 = vrot.lane.b32.xlu0 %v385, 64
    %v393 = vpop.permute.xlu0 %392
    %v398 = vrot.slane %v350, 3
    %v399 = vrot.slane %v351, 3
    %v400 = vsel %vm149, %v398, %v399
    %v401 = vrot.slane %v352, 3
    %v402 = vsel %vm149, %v399, %v401
    %v403 = vrot.slane %v353, 3
    %v404 = vsel %vm149, %v401, %v403
    %v405 = vsel %vm149, %v403, %v157
    %406 = vrot.lane.b32.xlu0 %v400, 96
    %v407 = vpop.permute.xlu0 %406
    %408 = vrot.lane.b32.xlu0 %v402, 96
    %v409 = vpop.permute.xlu0 %408
    %410 = vrot.lane.b32.xlu0 %v404, 96
    %v411 = vpop.permute.xlu0 %410
    %412 = vrot.lane.b32.xlu0 %v405, 96
    %v413 = vpop.permute.xlu0 %412
    %v418 = vrot.slane %v350, 4
    %v419 = vrot.slane %v351, 4
    %v420 = vsel %vm171, %v418, %v419
    %v421 = vrot.slane %v352, 4
    %v422 = vsel %vm171, %v419, %v421
    %v423 = vrot.slane %v353, 4
    %v424 = vsel %vm171, %v421, %v423
    %v425 = vsel %vm171, %v423, %v179
    %v426 = vsel %vm207, %v350, %v367
    %v427 = vsel %vm207, %v351, %v369
    %v428 = vsel %vm207, %v352, %v371
    %v429 = vsel %vm207, %v353, %v373
    %vm430 = vcmask 523264
    %v431 = vsel %vm430, %v426, %v387
    %v432 = vsel %vm430, %v427, %v389
    %v433 = vsel %vm430, %v428, %v391
    %v434 = vsel %vm430, %v429, %v393
    %vm435 = vcmask 785408
    %v436 = vsel %vm435, %v431, %v407
    %v437 = vsel %vm435, %v432, %v409
    %v438 = vsel %vm435, %v433, %v411
    %v439 = vsel %vm435, %v434, %v413
    %v440 = vld [vmem:[#allocation10 + $0x50] sm:$0xff]
    %v441 = vld [vmem:[#allocation10 + $0x60] sm:$0xff]
    %v442 = vld [vmem:[#allocation10 + $0x70] sm:$0xff]
    %v443 = vld [vmem:[#allocation10 + $0x80] sm:$0xff]
    %v444 = vld [vmem:[#allocation10 + $0x90] sm:$0xff]
    %v445 = vld [vmem:[#allocation10 + $0xa0] sm:$0xff]
    %v446 = vld [vmem:[#allocation10 + $0xb0] sm:$0xff]
    %v447 = vld [vmem:[#allocation10 + $0xc0] sm:$0xff]
    %v448 = vld [vmem:[#allocation10 + $0xd0] sm:$0xff]
    %v449 = vld [vmem:[#allocation10 + $0xe0] sm:$0xff]
    %v450 = vld [vmem:[#allocation10 + $0xf0] sm:$0xff]
    %v451 = vld [vmem:[#allocation10 + $0x100] sm:$0xff]
    %v452 = vld [vmem:[#allocation10 + $0x110] sm:$0xff]
    %v453 = vld [vmem:[#allocation10 + $0x120] sm:$0xff]
    %v454 = vld [vmem:[#allocation10 + $0x130] sm:$0xff]
    %v455 = vld [vmem:[#allocation10 + $0x140] sm:$0xff]
    %v456 = vld [vmem:[#allocation10 + $0x150] sm:$0xff]
    %v457 = vld [vmem:[#allocation10 + $0x160] sm:$0xff]
    %v458 = vld [vmem:[#allocation10 + $0x170] sm:$0xff]
    %v459 = vld [vmem:[#allocation10 + $0x180] sm:$0xff]
    %v460 = vsel %vm207, %v420, 0
    %v462 = vsel %vm207, %v422, 0
    %v464 = vsel %vm207, %v424, 0
    %v466 = vsel %vm207, %v425, 0
    %468 = vmatprep.subr.mxu0 0.0
    %469 = vmatpush1.msra.mxu0 %v440
    %470 = vmatprep.subr.mxu0 0.0
    %471 = vmatpush1.msra.mxu0 %v441
    %472 = vmatprep.subr.mxu0 0.0
    %473 = vmatpush1.msra.mxu0 %v442
    %474 = vmatprep.subr.mxu0 0.0
    %475 = vmatpush1.msra.mxu0 %v443
    %476 = vmatprep.subr.mxu0 0.0
    %477 = vmatpush1.msra.mxu0 %v444
    %478 = vmatprep.subr.mxu0 0.0
    %479 = vmatpush1.msra.mxu0 %v445
    %480 = vmatprep.subr.mxu0 0.0
    %481 = vmatpush1.msra.mxu0 %v446
    %482 = vmatprep.subr.mxu0 0.0
    %483 = vmatpush1.msra.mxu0 %v447
    %484 = vmatprep.subr.mxu0 0.0
    %485 = vmatpush1.msra.mxu0 %v448
    %486 = vmatprep.subr.mxu0 0.0
    %487 = vmatpush1.msra.mxu0 %v449
    %488 = vmatprep.subr.mxu0 0.0
    %489 = vmatpush1.msra.mxu0 %v450
    %490 = vmatprep.subr.mxu0 0.0
    %491 = vmatpush1.msra.mxu0 %v451
    %492 = vmatprep.subr.mxu0 0.0
    %493 = vmatpush1.msra.mxu0 %v452
    %494 = vmatprep.subr.mxu0 0.0
    %495 = vmatpush1.msra.mxu0 %v453
    %496 = vmatprep.subr.mxu0 0.0
    %497 = vmatpush1.msra.mxu0 %v454
    %498 = vmatprep.subr.mxu0 0.0
    %499 = vmatpush1.msra.mxu0 %v455
    %500 = vmatprep.subr.mxu0 0.0
    %501 = vmatpush1.msra.mxu0 %v456
    %502 = vmatprep.subr.mxu0 0.0
    %503 = vmatpush1.msra.mxu0 %v457
    %504 = vmatprep.subr.mxu0 0.0
    %505 = vmatpush1.msra.mxu0 %v458
    %506 = vmatprep.subr.mxu0 0.0
    %507 = vmatpush1.msra.mxu0 %v459
    %508 = vmatprep.subr.mxu0 0.0
    %509 = vmatpush1.msra.mxu0 0.0
    %510 = vmatprep.subr.mxu0 0.0
    %511 = vmatpush1.msra.mxu0 0.0
    %512 = vmatprep.subr.mxu0 0.0
    %513 = vmatpush1.msra.mxu0 0.0
    %514 = vmatprep.subr.mxu0 0.0
    %515 = vmatpush1.msra.mxu0 0.0
    %516 = vmatprep.subr.mxu0 0.0
    %517 = vmatpush1.msra.mxu0 0.0
    %518 = vmatprep.subr.mxu0 0.0
    %519 = vmatpush1.msra.mxu0 0.0
    %520 = vmatprep.subr.mxu0 0.0
    %521 = vmatpush1.msra.mxu0 0.0
    %522 = vmatprep.subr.mxu0 0.0
    %523 = vmatpush1.msra.mxu0 0.0
    %524 = vmatprep.subr.mxu0 0.0
    %525 = vmatpush1.msra.mxu0 0.0
    %526 = vmatprep.subr.mxu0 0.0
    %527 = vmatpush1.msra.mxu0 0.0
    %528 = vmatprep.subr.mxu0 0.0
    %529 = vmatpush1.msra.mxu0 0.0
    %530 = vmatprep.subr.mxu0 0.0
    %531 = vmatpush1.msra.mxu0 0.0
    %532 = vmatprep.mubr.f32.mxu0 %v460
    %533 = vmatmul.mubr.f32.gmra.mrb[0].mxu0 %v436
    %v534 = vpop.f32.mrb[0].mxu0
    %v535 = vadd.f32 0.0, %v534
    %v536 = vpop.f32.mrb[0].mxu0
    %537 = vmatprep.mubr.f32.mxu0 %v462
    %538 = vmatmul.mubr.f32.gmra.mrb[0].mxu0 %v437
    %v539 = vpop.f32.mrb[0].mxu0
    %v540 = vadd.f32 0.0, %v539
    %v541 = vpop.f32.mrb[0].mxu0
    %542 = vmatprep.mubr.f32.mxu0 %v464
    %543 = vmatmul.mubr.f32.gmra.mrb[0].mxu0 %v438
    %v544 = vpop.f32.mrb[0].mxu0
    %v545 = vadd.f32 0.0, %v544
    %v546 = vpop.f32.mrb[0].mxu0
    %547 = vmatprep.mubr.f32.mxu0 %v466
    %548 = vmatmul.mubr.f32.gmra.mrb[0].mxu0 %v439
    %v549 = vpop.f32.mrb[0].mxu0
    %v550 = vadd.f32 0.0, %v549
    %v551 = vpop.f32.mrb[0].mxu0
    %552 = vdwg.mxu0
    %v553 = vld [vmem:[#allocation11 + $0x2] ss:$0 sm:$0xff]
    %v554 = vld [vmem:[#allocation11 + $0x3] ss:$0 sm:$0xff]
    %v555 = vmul.f32 %v535, %v553
    %v556 = vmul.f32 %v540, %v553
    %v557 = vmul.f32 %v545, %v553
    %v558 = vmul.f32 %v550, %v553
    %v559 = vadd.f32 %v555, %v554
    %v560 = vadd.f32 %v556, %v554
    %v561 = vadd.f32 %v557, %v554
    %v562 = vadd.f32 %v558, %v554
    %v563 = vmax.f32 %v559, 0.0
    %v564 = vmax.f32 %v560, 0.0
    %v565 = vmax.f32 %v561, 0.0
    %v566 = vmax.f32 %v562, 0.0
    %vm567 = vcmp.lt.s32.totalorder %v94, 8
    %vm568 = vcmp.lt.s32.totalorder %v95, 8
    %v569 = vsel %vm567, 1, 0
    %v570 = vsel %vm568, 1, 0
    %571 = vset.pattern.permute.xlu0 0
    %572 = vperm.xlu0 %571, %v569
    %v573 = vpop.permute.xlu0 %572
    %574 = vset.pattern.permute.xlu0 0
    %575 = vperm.xlu0 %574, %v570
    %v576 = vpop.permute.xlu0 %575
    %vm577 = vcmp.eq.s32.totalorder %v573, 1
    %vm578 = vcmp.eq.s32.totalorder %v576, 1
    %v579 = vsel %vm577, %v563, 0.0
    %v580 = vsel %vm578, %v564, 0.0
    %v581 = vsel %vm577, %v565, 0.0
    %v582 = vsel %vm578, %v566, 0.0
    %583 = vst.msk [vmem:[#allocation4 + $0x1] sm:$0xff] %vm430, %v579
    %584 = vst.msk [vmem:[#allocation4 + $0x9] sm:$0xff] %vm430, %v580
    %585 = vst.msk [vmem:[#allocation4 + $0x11] sm:$0xff] %vm430, %v581
    %vm586 = vcmask 522240
    %587 = vst.msk [vmem:[#allocation4 + $0x19] sm:$0x7f] %vm586, %v582
    %v588 = vld [vmem:[#allocation4] sm:$0xff]
    %v589 = vld [vmem:[#allocation4 + $0x8] sm:$0xff]
    %v590 = vld [vmem:[#allocation4 + $0x10] sm:$0xff]
    %v591 = vld [vmem:[#allocation4 + $0x18] sm:$0xff]
    %v596 = vrot.slane %v588, 1
    %v597 = vrot.slane %v589, 1
    %v598 = vsel %vm105, %v596, %v597
    %v599 = vrot.slane %v590, 1
    %v600 = vsel %vm105, %v597, %v599
    %v601 = vrot.slane %v591, 1
    %v602 = vsel %vm105, %v599, %v601
    %v603 = vsel %vm105, %v601, %v113
    %604 = vrot.lane.b32.xlu0 %v598, 64
    %v605 = vpop.permute.xlu0 %604
    %606 = vrot.lane.b32.xlu0 %v600, 64
    %v607 = vpop.permute.xlu0 %606
    %608 = vrot.lane.b32.xlu0 %v602, 64
    %v609 = vpop.permute.xlu0 %608
    %610 = vrot.lane.b32.xlu0 %v603, 64
    %v611 = vpop.permute.xlu0 %610
    %v616 = vrot.slane %v588, 2
    %v617 = vrot.slane %v589, 2
    %v618 = vsel %vm127, %v616, %v617
    %v619 = vrot.slane %v590, 2
    %v620 = vsel %vm127, %v617, %v619
    %v621 = vrot.slane %v591, 2
    %v622 = vsel %vm127, %v619, %v621
    %v623 = vsel %vm127, %v621, %v135
    %v624 = vsel %vm430, %v588, %v605
    %v625 = vsel %vm430, %v589, %v607
    %v626 = vsel %vm430, %v590, %v609
    %v627 = vsel %vm430, %v591, %v611
    %v628 = vld [vmem:[#allocation10 + $0x190] sm:$0xff]
    %v629 = vld [vmem:[#allocation10 + $0x1a0] sm:$0xff]
    %v630 = vld [vmem:[#allocation10 + $0x1b0] sm:$0xff]
    %v631 = vld [vmem:[#allocation10 + $0x1c0] sm:$0xff]
    %v632 = vld [vmem:[#allocation10 + $0x1d0] sm:$0xff]
    %v633 = vld [vmem:[#allocation10 + $0x1e0] sm:$0xff]
    %v634 = vld [vmem:[#allocation10 + $0x1f0] sm:$0xff]
    %v635 = vld [vmem:[#allocation10 + $0x200] sm:$0xff]
    %v636 = vld [vmem:[#allocation10 + $0x210] sm:$0xff]
    %v637 = vld [vmem:[#allocation10 + $0x220] sm:$0xff]
    %v638 = vld [vmem:[#allocation10 + $0x230] sm:$0xff]
    %v639 = vld [vmem:[#allocation10 + $0x240] sm:$0xff]
    %v640 = vld [vmem:[#allocation10 + $0x250] sm:$0xff]
    %v641 = vld [vmem:[#allocation10 + $0x260] sm:$0xff]
    %v642 = vld [vmem:[#allocation10 + $0x270] sm:$0xff]
    %v643 = vld [vmem:[#allocation10 + $0x280] sm:$0xff]
    %v644 = vld [vmem:[#allocation10 + $0x290] sm:$0xff]
    %v645 = vld [vmem:[#allocation10 + $0x2a0] sm:$0xff]
    %v646 = vld [vmem:[#allocation10 + $0x2b0] sm:$0xff]
    %v647 = vld [vmem:[#allocation10 + $0x2c0] sm:$0xff]
    %v648 = vld [vmem:[#allocation10 + $0x2d0] sm:$0xff]
    %v649 = vld [vmem:[#allocation10 + $0x2e0] sm:$0xff]
    %v650 = vld [vmem:[#allocation10 + $0x2f0] sm:$0xff]
    %v651 = vld [vmem:[#allocation10 + $0x300] sm:$0xff]
    %v652 = vsel %vm430, %v618, 0
    %v654 = vsel %vm430, %v620, 0
    %v656 = vsel %vm430, %v622, 0
    %v658 = vsel %vm430, %v623, 0
    %660 = vmatprep.subr.mxu0 0.0
    %661 = vmatpush1.msra.mxu0 %v628
    %662 = vmatprep.subr.mxu0 0.0
    %663 = vmatpush1.msra.mxu0 %v629
    %664 = vmatprep.subr.mxu0 0.0
    %665 = vmatpush1.msra.mxu0 %v630
    %666 = vmatprep.subr.mxu0 0.0
    %667 = vmatpush1.msra.mxu0 %v631
    %668 = vmatprep.subr.mxu0 0.0
    %669 = vmatpush1.msra.mxu0 %v632
    %670 = vmatprep.subr.mxu0 0.0
    %671 = vmatpush1.msra.mxu0 %v633
    %672 = vmatprep.subr.mxu0 0.0
    %673 = vmatpush1.msra.mxu0 %v634
    %674 = vmatprep.subr.mxu0 0.0
    %675 = vmatpush1.msra.mxu0 %v635
    %676 = vmatprep.subr.mxu0 0.0
    %677 = vmatpush1.msra.mxu0 %v636
    %678 = vmatprep.subr.mxu0 0.0
    %679 = vmatpush1.msra.mxu0 %v637
    %680 = vmatprep.subr.mxu0 0.0
    %681 = vmatpush1.msra.mxu0 %v638
    %682 = vmatprep.subr.mxu0 0.0
    %683 = vmatpush1.msra.mxu0 %v639
    %684 = vmatprep.subr.mxu0 0.0
    %685 = vmatpush1.msra.mxu0 %v640
    %686 = vmatprep.subr.mxu0 0.0
    %687 = vmatpush1.msra.mxu0 %v641
    %688 = vmatprep.subr.mxu0 0.0
    %689 = vmatpush1.msra.mxu0 %v642
    %690 = vmatprep.subr.mxu0 0.0
    %691 = vmatpush1.msra.mxu0 %v643
    %692 = vmatprep.subr.mxu0 0.0
    %693 = vmatpush1.msra.mxu0 %v644
    %694 = vmatprep.subr.mxu0 0.0
    %695 = vmatpush1.msra.mxu0 %v645
    %696 = vmatprep.subr.mxu0 0.0
    %697 = vmatpush1.msra.mxu0 %v646
    %698 = vmatprep.subr.mxu0 0.0
    %699 = vmatpush1.msra.mxu0 %v647
    %700 = vmatprep.subr.mxu0 0.0
    %701 = vmatpush1.msra.mxu0 %v648
    %702 = vmatprep.subr.mxu0 0.0
    %703 = vmatpush1.msra.mxu0 %v649
    %704 = vmatprep.subr.mxu0 0.0
    %705 = vmatpush1.msra.mxu0 %v650
    %706 = vmatprep.subr.mxu0 0.0
    %707 = vmatpush1.msra.mxu0 %v651
    %708 = vmatprep.subr.mxu0 0.0
    %709 = vmatpush1.msra.mxu0 0.0
    %710 = vmatprep.subr.mxu0 0.0
    %711 = vmatpush1.msra.mxu0 0.0
    %712 = vmatprep.subr.mxu0 0.0
    %713 = vmatpush1.msra.mxu0 0.0
    %714 = vmatprep.subr.mxu0 0.0
    %715 = vmatpush1.msra.mxu0 0.0
    %716 = vmatprep.subr.mxu0 0.0
    %717 = vmatpush1.msra.mxu0 0.0
    %718 = vmatprep.subr.mxu0 0.0
    %719 = vmatpush1.msra.mxu0 0.0
    %720 = vmatprep.subr.mxu0 0.0
    %721 = vmatpush1.msra.mxu0 0.0
    %722 = vmatprep.subr.mxu0 0.0
    %723 = vmatpush1.msra.mxu0 0.0
    %724 = vmatprep.mubr.f32.mxu0 %v652
    %725 = vmatmul.mubr.f32.gmra.mrb[0].mxu0 %v624
    %v726 = vpop.f32.mrb[0].mxu0
    %v727 = vadd.f32 0.0, %v726
    %v728 = vpop.f32.mrb[0].mxu0
    %729 = vmatprep.mubr.f32.mxu0 %v654
    %730 = vmatmul.mubr.f32.gmra.mrb[0].mxu0 %v625
    %v731 = vpop.f32.mrb[0].mxu0
    %v732 = vadd.f32 0.0, %v731
    %v733 = vpop.f32.mrb[0].mxu0
    %734 = vmatprep.mubr.f32.mxu0 %v656
    %735 = vmatmul.mubr.f32.gmra.mrb[0].mxu0 %v626
    %v736 = vpop.f32.mrb[0].mxu0
    %v737 = vadd.f32 0.0, %v736
    %v738 = vpop.f32.mrb[0].mxu0
    %739 = vmatprep.mubr.f32.mxu0 %v658
    %740 = vmatmul.mubr.f32.gmra.mrb[0].mxu0 %v627
    %v741 = vpop.f32.mrb[0].mxu0
    %v742 = vadd.f32 0.0, %v741
    %v743 = vpop.f32.mrb[0].mxu0
    %744 = vdwg.mxu0
    %v745 = vld [vmem:[#allocation11 + $0x4] ss:$0 sm:$0xff]
    %v746 = vld [vmem:[#allocation11 + $0x5] ss:$0 sm:$0xff]
    %v747 = vmul.f32 %v727, %v745
    %v748 = vmul.f32 %v732, %v745
    %v749 = vmul.f32 %v737, %v745
    %v750 = vmul.f32 %v742, %v745
    %v751 = vadd.f32 %v747, %v746
    %v752 = vadd.f32 %v748, %v746
    %v753 = vadd.f32 %v749, %v746
    %v754 = vadd.f32 %v750, %v746
    %v755 = vmax.f32 %v751, 0.0
    %v756 = vmax.f32 %v752, 0.0
    %v757 = vmax.f32 %v753, 0.0
    %v758 = vmax.f32 %v754, 0.0
    %v759 = vsel %vm577, %v755, 0.0
    %v760 = vsel %vm578, %v756, 0.0
    %v761 = vsel %vm577, %v757, 0.0
    %v762 = vsel %vm578, %v758, 0.0
    %763 = vst [vmem:[#allocation5 + $0x1] sm:$0xff] %v759
    %764 = vst [vmem:[#allocation5 + $0x9] sm:$0xff] %v760
    %765 = vst [vmem:[#allocation5 + $0x11] sm:$0xff] %v761
    %766 = vst [vmem:[#allocation5 + $0x19] sm:$0x7f] %v762
    %v767 = vld [vmem:[#allocation5] sm:$0xff]
    %v768 = vld [vmem:[#allocation5 + $0x8] sm:$0xff]
    %v769 = vld [vmem:[#allocation5 + $0x10] sm:$0xff]
    %v770 = vld [vmem:[#allocation5 + $0x18] sm:$0xff]
    %v775 = vrot.slane %v767, 1
    %v776 = vrot.slane %v768, 1
    %v777 = vsel %vm105, %v775, %v776
    %v778 = vrot.slane %v769, 1
    %v779 = vsel %vm105, %v776, %v778
    %v780 = vrot.slane %v770, 1
    %v781 = vsel %vm105, %v778, %v780
    %v782 = vsel %vm105, %v780, %v113
    %v787 = vrot.slane %v767, 2
    %v788 = vrot.slane %v768, 2
    %v789 = vsel %vm127, %v787, %v788
    %v790 = vrot.slane %v769, 2
    %v791 = vsel %vm127, %v788, %v790
    %v792 = vrot.slane %v770, 2
    %v793 = vsel %vm127, %v790, %v792
    %v794 = vsel %vm127, %v792, %v135
    %v799 = vld [vmem:[#allocation10 + $0x310] sm:$0xff]
    %v800 = vld [vmem:[#allocation10 + $0x318] sm:$0xff]
    %v801 = vld [vmem:[#allocation10 + $0x320] sm:$0xff]
    %v802 = vld [vmem:[#allocation10 + $0x328] sm:$0xff]
    %v803 = vld [vmem:[#allocation10 + $0x330] sm:$0xff]
    %v804 = vld [vmem:[#allocation10 + $0x338] sm:$0xff]
    %v805 = vld [vmem:[#allocation10 + $0x340] sm:$0xff]
    %v806 = vld [vmem:[#allocation10 + $0x348] sm:$0xff]
    %v807 = vld [vmem:[#allocation10 + $0x350] sm:$0xff]
    %v808 = vld [vmem:[#allocation10 + $0x358] sm:$0xff]
    %v809 = vld [vmem:[#allocation10 + $0x360] sm:$0xff]
    %v810 = vld [vmem:[#allocation10 + $0x368] sm:$0xff]
    %v811 = vld [vmem:[#allocation10 + $0x370] sm:$0xff]
    %v812 = vld [vmem:[#allocation10 + $0x378] sm:$0xff]
    %v813 = vld [vmem:[#allocation10 + $0x380] sm:$0xff]
    %v814 = vld [vmem:[#allocation10 + $0x388] sm:$0xff]
    %v815 = vld [vmem:[#allocation10 + $0x390] sm:$0xff]
    %v816 = vld [vmem:[#allocation10 + $0x398] sm:$0xff]
    %v817 = vld [vmem:[#allocation10 + $0x3a0] sm:$0xff]
    %v818 = vld [vmem:[#allocation10 + $0x3a8] sm:$0xff]
    %v819 = vld [vmem:[#allocation10 + $0x3b0] sm:$0xff]
    %v820 = vld [vmem:[#allocation10 + $0x3b8] sm:$0xff]
    %v821 = vld [vmem:[#allocation10 + $0x3c0] sm:$0xff]
    %v822 = vld [vmem:[#allocation10 + $0x3c8] sm:$0xff]
    %v823 = vld [vmem:[#allocation10 + $0x3d0] sm:$0xff]
    %v824 = vld [vmem:[#allocation10 + $0x3d8] sm:$0xff]
    %v825 = vld [vmem:[#allocation10 + $0x3e0] sm:$0xff]
    %v826 = vld [vmem:[#allocation10 + $0x3e8] sm:$0xff]
    %v827 = vld [vmem:[#allocation10 + $0x3f0] sm:$0xff]
    %v828 = vld [vmem:[#allocation10 + $0x3f8] sm:$0xff]
    %v829 = vld [vmem:[#allocation10 + $0x400] sm:$0xff]
    %v830 = vld [vmem:[#allocation10 + $0x408] sm:$0xff]
    %v831 = vld [vmem:[#allocation10 + $0x410] sm:$0xff]
    %v832 = vld [vmem:[#allocation10 + $0x418] sm:$0xff]
    %v833 = vld [vmem:[#allocation10 + $0x420] sm:$0xff]
    %v834 = vld [vmem:[#allocation10 + $0x428] sm:$0xff]
    %v835 = vld [vmem:[#allocation10 + $0x430] sm:$0xff]
    %v836 = vld [vmem:[#allocation10 + $0x438] sm:$0xff]
    %v837 = vld [vmem:[#allocation10 + $0x440] sm:$0xff]
    %v838 = vld [vmem:[#allocation10 + $0x448] sm:$0xff]
    %v839 = vld [vmem:[#allocation10 + $0x450] sm:$0xff]
    %v840 = vld [vmem:[#allocation10 + $0x458] sm:$0xff]
    %v841 = vld [vmem:[#allocation10 + $0x460] sm:$0xff]
    %v842 = vld [vmem:[#allocation10 + $0x468] sm:$0xff]
    %v843 = vld [vmem:[#allocation10 + $0x470] sm:$0xff]
    %v844 = vld [vmem:[#allocation10 + $0x478] sm:$0xff]
    %v845 = vld [vmem:[#allocation10 + $0x480] sm:$0xff]
    %v846 = vld [vmem:[#allocation10 + $0x488] sm:$0xff]
    %v847 = vld [vmem:[#allocation10 + $0x490] sm:$0xff]
    %v848 = vld [vmem:[#allocation10 + $0x498] sm:$0xff]
    %v849 = vld [vmem:[#allocation10 + $0x4a0] sm:$0xff]
    %v850 = vld [vmem:[#allocation10 + $0x4a8] sm:$0xff]
    %v851 = vld [vmem:[#allocation10 + $0x4b0] sm:$0xff]
    %v852 = vld [vmem:[#allocation10 + $0x4b8] sm:$0xff]
    %v853 = vld [vmem:[#allocation10 + $0x4c0] sm:$0xff]
    %v854 = vld [vmem:[#allocation10 + $0x4c8] sm:$0xff]
    %v855 = vld [vmem:[#allocation10 + $0x4d0] sm:$0xff]
    %v856 = vld [vmem:[#allocation10 + $0x4d8] sm:$0xff]
    %v857 = vld [vmem:[#allocation10 + $0x4e0] sm:$0xff]
    %v858 = vld [vmem:[#allocation10 + $0x4e8] sm:$0xff]
    %v859 = vld [vmem:[#allocation10 + $0x4f0] sm:$0xff]
    %v860 = vld [vmem:[#allocation10 + $0x4f8] sm:$0xff]
    %v861 = vld [vmem:[#allocation10 + $0x500] sm:$0xff]
    %v862 = vld [vmem:[#allocation10 + $0x508] sm:$0xff]
    %v863 = vld [vmem:[#allocation10 + $0x510] sm:$0xff]
    %v864 = vld [vmem:[#allocation10 + $0x518] sm:$0xff]
    %v865 = vld [vmem:[#allocation10 + $0x520] sm:$0xff]
    %v866 = vld [vmem:[#allocation10 + $0x528] sm:$0xff]
    %v867 = vld [vmem:[#allocation10 + $0x530] sm:$0xff]
    %v868 = vld [vmem:[#allocation10 + $0x538] sm:$0xff]
    %v869 = vld [vmem:[#allocation10 + $0x540] sm:$0xff]
    %v870 = vld [vmem:[#allocation10 + $0x548] sm:$0xff]
    %v871 = vld [vmem:[#allocation10 + $0x550] sm:$0xff]
    %v872 = vld [vmem:[#allocation10 + $0x558] sm:$0xff]
    %v873 = vld [vmem:[#allocation10 + $0x560] sm:$0xff]
    %v874 = vld [vmem:[#allocation10 + $0x568] sm:$0xff]
    %v875 = vld [vmem:[#allocation10 + $0x570] sm:$0xff]
    %v876 = vld [vmem:[#allocation10 + $0x578] sm:$0xff]
    %v877 = vld [vmem:[#allocation10 + $0x580] sm:$0xff]
    %v878 = vld [vmem:[#allocation10 + $0x588] sm:$0xff]
    %v879 = vld [vmem:[#allocation10 + $0x590] sm:$0xff]
    %v880 = vld [vmem:[#allocation10 + $0x598] sm:$0xff]
    %v881 = vld [vmem:[#allocation10 + $0x5a0] sm:$0xff]
    %v882 = vld [vmem:[#allocation10 + $0x5a8] sm:$0xff]
    %v883 = vld [vmem:[#allocation10 + $0x5b0] sm:$0xff]
    %v884 = vld [vmem:[#allocation10 + $0x5b8] sm:$0xff]
    %v885 = vld [vmem:[#allocation10 + $0x5c0] sm:$0xff]
    %v886 = vld [vmem:[#allocation10 + $0x5c8] sm:$0xff]
    %v887 = vld [vmem:[#allocation10 + $0x5d0] sm:$0xff]
    %v888 = vld [vmem:[#allocation10 + $0x5d8] sm:$0xff]
    %v889 = vld [vmem:[#allocation10 + $0x5e0] sm:$0xff]
    %v890 = vld [vmem:[#allocation10 + $0x5e8] sm:$0xff]
    %v891 = vld [vmem:[#allocation10 + $0x5f0] sm:$0xff]
    %v892 = vld [vmem:[#allocation10 + $0x5f8] sm:$0xff]
    %v893 = vld [vmem:[#allocation10 + $0x600] sm:$0xff]
    %v894 = vld [vmem:[#allocation10 + $0x608] sm:$0xff]
    %895 = vmatprep.subr.mxu0 %v800
    %896 = vmatpush1.msra.mxu0 %v799
    %897 = vmatprep.subr.mxu0 %v802
    %898 = vmatpush1.msra.mxu0 %v801
    %899 = vmatprep.subr.mxu0 %v804
    %900 = vmatpush1.msra.mxu0 %v803
    %901 = vmatprep.subr.mxu0 %v806
    %902 = vmatpush1.msra.mxu0 %v805
    %903 = vmatprep.subr.mxu0 %v808
    %904 = vmatpush1.msra.mxu0 %v807
    %905 = vmatprep.subr.mxu0 %v810
    %906 = vmatpush1.msra.mxu0 %v809
    %907 = vmatprep.subr.mxu0 %v812
    %908 = vmatpush1.msra.mxu0 %v811
    %909 = vmatprep.subr.mxu0 %v814
    %910 = vmatpush1.msra.mxu0 %v813
    %911 = vmatprep.subr.mxu0 %v816
    %912 = vmatpush1.msra.mxu0 %v815
    %913 = vmatprep.subr.mxu0 %v818
    %914 = vmatpush1.msra.mxu0 %v817
    %915 = vmatprep.subr.mxu0 %v820
    %916 = vmatpush1.msra.mxu0 %v819
    %917 = vmatprep.subr.mxu0 %v822
    %918 = vmatpush1.msra.mxu0 %v821
    %919 = vmatprep.subr.mxu0 %v824
    %920 = vmatpush1.msra.mxu0 %v823
    %921 = vmatprep.subr.mxu0 %v826
    %922 = vmatpush1.msra.mxu0 %v825
    %923 = vmatprep.subr.mxu0 %v828
    %924 = vmatpush1.msra.mxu0 %v827
    %925 = vmatprep.subr.mxu0 %v830
    %926 = vmatpush1.msra.mxu0 %v829
    %927 = vmatprep.subr.mxu0 %v832
    %928 = vmatpush1.msra.mxu0 %v831
    %929 = vmatprep.subr.mxu0 %v834
    %930 = vmatpush1.msra.mxu0 %v833
    %931 = vmatprep.subr.mxu0 %v836
    %932 = vmatpush1.msra.mxu0 %v835
    %933 = vmatprep.subr.mxu0 %v838
    %934 = vmatpush1.msra.mxu0 %v837
    %935 = vmatprep.subr.mxu0 %v840
    %936 = vmatpush1.msra.mxu0 %v839
    %937 = vmatprep.subr.mxu0 %v842
    %938 = vmatpush1.msra.mxu0 %v841
    %939 = vmatprep.subr.mxu0 %v844
    %940 = vmatpush1.msra.mxu0 %v843
    %941 = vmatprep.subr.mxu0 %v846
    %942 = vmatpush1.msra.mxu0 %v845
    %943 = vmatprep.subr.mxu0 %v848
    %944 = vmatpush1.msra.mxu0 %v847
    %945 = vmatprep.subr.mxu0 %v850
    %946 = vmatpush1.msra.mxu0 %v849
    %947 = vmatprep.subr.mxu0 %v852
    %948 = vmatpush1.msra.mxu0 %v851
    %949 = vmatprep.subr.mxu0 %v854
    %950 = vmatpush1.msra.mxu0 %v853
    %951 = vmatprep.subr.mxu0 %v856
    %952 = vmatpush1.msra.mxu0 %v855
    %953 = vmatprep.subr.mxu0 %v858
    %954 = vmatpush1.msra.mxu0 %v857
    %955 = vmatprep.subr.mxu0 %v860
    %956 = vmatpush1.msra.mxu0 %v859
    %957 = vmatprep.subr.mxu0 %v862
    %958 = vmatpush1.msra.mxu0 %v861
    %959 = vmatprep.mubr.f32.mxu0 %v777
    %960 = vmatmul.mubr.f32.gmra.mrb[0].mxu0 %v767
    %v961 = vpop.f32.mrb[0].mxu0
    %v962 = vadd.f32 0.0, %v961
    %v963 = vpop.f32.mrb[0].mxu0
    %v964 = vadd.f32 0.0, %v963
    %965 = vmatprep.mubr.f32.mxu0 %v779
    %966 = vmatmul.mubr.f32.gmra.mrb[0].mxu0 %v768
    %v967 = vpop.f32.mrb[0].mxu0
    %v968 = vadd.f32 0.0, %v967
    %v969 = vpop.f32.mrb[0].mxu0
    %v970 = vadd.f32 0.0, %v969
    %971 = vmatprep.mubr.f32.mxu0 %v781
    %972 = vmatmul.mubr.f32.gmra.mrb[0].mxu0 %v769
    %v973 = vpop.f32.mrb[0].mxu0
    %v974 = vadd.f32 0.0, %v973
    %v975 = vpop.f32.mrb[0].mxu0
    %v976 = vadd.f32 0.0, %v975
    %977 = vmatprep.mubr.f32.mxu0 %v782
    %978 = vmatmul.mubr.f32.gmra.mrb[0].mxu0 %v770
    %v979 = vpop.f32.mrb[0].mxu0
    %v980 = vadd.f32 0.0, %v979
    %v981 = vpop.f32.mrb[0].mxu0
    %v982 = vadd.f32 0.0, %v981
    %983 = vdwg.mxu0
    %984 = vmatprep.subr.mxu0 %v864
    %985 = vmatpush1.msra.mxu0 %v863
    %986 = vmatprep.subr.mxu0 %v866
    %987 = vmatpush1.msra.mxu0 %v865
    %988 = vmatprep.subr.mxu0 %v868
    %989 = vmatpush1.msra.mxu0 %v867
    %990 = vmatprep.subr.mxu0 %v870
    %991 = vmatpush1.msra.mxu0 %v869
    %992 = vmatprep.subr.mxu0 %v872
    %993 = vmatpush1.msra.mxu0 %v871
    %994 = vmatprep.subr.mxu0 %v874
    %995 = vmatpush1.msra.mxu0 %v873
    %996 = vmatprep.subr.mxu0 %v876
    %997 = vmatpush1.msra.mxu0 %v875
    %998 = vmatprep.subr.mxu0 %v878
    %999 = vmatpush1.msra.mxu0 %v877
    %1000 = vmatprep.subr.mxu0 %v880
    %1001 = vmatpush1.msra.mxu0 %v879
    %1002 = vmatprep.subr.mxu0 %v882
    %1003 = vmatpush1.msra.mxu0 %v881
    %1004 = vmatprep.subr.mxu0 %v884
    %1005 = vmatpush1.msra.mxu0 %v883
    %1006 = vmatprep.subr.mxu0 %v886
    %1007 = vmatpush1.msra.mxu0 %v885
    %1008 = vmatprep.subr.mxu0 %v888
    %1009 = vmatpush1.msra.mxu0 %v887
    %1010 = vmatprep.subr.mxu0 %v890
    %1011 = vmatpush1.msra.mxu0 %v889
    %1012 = vmatprep.subr.mxu0 %v892
    %1013 = vmatpush1.msra.mxu0 %v891
    %1014 = vmatprep.subr.mxu0 %v894
    %1015 = vmatpush1.msra.mxu0 %v893
    %1016 = vmatprep.subr.mxu0 0.0
    %1017 = vmatpush1.msra.mxu0 0.0
    %1018 = vmatprep.subr.mxu0 0.0
    %1019 = vmatpush1.msra.mxu0 0.0
    %1020 = vmatprep.subr.mxu0 0.0
    %1021 = vmatpush1.msra.mxu0 0.0
    %1022 = vmatprep.subr.mxu0 0.0
    %1023 = vmatpush1.msra.mxu0 0.0
    %1024 = vmatprep.subr.mxu0 0.0
    %1025 = vmatpush1.msra.mxu0 0.0
    %1026 = vmatprep.subr.mxu0 0.0
    %1027 = vmatpush1.msra.mxu0 0.0
    %1028 = vmatprep.subr.mxu0 0.0
    %1029 = vmatpush1.msra.mxu0 0.0
    %1030 = vmatprep.subr.mxu0 0.0
    %1031 = vmatpush1.msra.mxu0 0.0
    %1032 = vmatprep.subr.mxu0 0.0
    %1033 = vmatpush1.msra.mxu0 0.0
    %1034 = vmatprep.subr.mxu0 0.0
    %1035 = vmatpush1.msra.mxu0 0.0
    %1036 = vmatprep.subr.mxu0 0.0
    %1037 = vmatpush1.msra.mxu0 0.0
    %1038 = vmatprep.subr.mxu0 0.0
    %1039 = vmatpush1.msra.mxu0 0.0
    %1040 = vmatprep.subr.mxu0 0.0
    %1041 = vmatpush1.msra.mxu0 0.0
    %1042 = vmatprep.subr.mxu0 0.0
    %1043 = vmatpush1.msra.mxu0 0.0
    %1044 = vmatprep.subr.mxu0 0.0
    %1045 = vmatpush1.msra.mxu0 0.0
    %1046 = vmatprep.subr.mxu0 0.0
    %1047 = vmatpush1.msra.mxu0 0.0
    %1048 = vmatprep.mubr.f32.mxu0 0.0
    %1049 = vmatmul.mubr.f32.gmra.mrb[0].mxu0 %v789
    %v1050 = vpop.f32.mrb[0].mxu0
    %v1051 = vadd.f32 %v962, %v1050
    %v1052 = vpop.f32.mrb[0].mxu0
    %v1053 = vadd.f32 %v964, %v1052
    %1054 = vmatprep.mubr.f32.mxu0 0.0
    %1055 = vmatmul.mubr.f32.gmra.mrb[0].mxu0 %v791
    %v1056 = vpop.f32.mrb[0].mxu0
    %v1057 = vadd.f32 %v968, %v1056
    %v1058 = vpop.f32.mrb[0].mxu0
    %v1059 = vadd.f32 %v970, %v1058
    %1060 = vmatprep.mubr.f32.mxu0 0.0
    %1061 = vmatmul.mubr.f32.gmra.mrb[0].mxu0 %v793
    %v1062 = vpop.f32.mrb[0].mxu0
    %v1063 = vadd.f32 %v974, %v1062
    %v1064 = vpop.f32.mrb[0].mxu0
    %v1065 = vadd.f32 %v976, %v1064
    %1066 = vmatprep.mubr.f32.mxu0 0.0
    %1067 = vmatmul.mubr.f32.gmra.mrb[0].mxu0 %v794
    %v1068 = vpop.f32.mrb[0].mxu0
    %v1069 = vadd.f32 %v980, %v1068
    %v1070 = vpop.f32.mrb[0].mxu0
    %v1071 = vadd.f32 %v982, %v1070
    %1072 = vdwg.mxu0
    %s1073 = scalar_lea.vmem [#allocation11], 6
    %v1074 = vld [vmem:[%s1073] ss:$8 sm:$0x3]
    %s1075 = scalar_lea.vmem [#allocation11], 7
    %v1076 = vld [vmem:[%s1075] ss:$8 sm:$0x3]
    %v1078 = vlaneseq
    %v1079 = vshrl.u32 %v1078, 7
    %v1080 = vsub.s32 0, %v1079
    %v1081 = vrot.slane %v1074, %v1080
    %v1082 = vlaneseq
    %v1083 = vshrl.u32 %v1082, 7
    %v1084 = vsub.s32 1, %v1083
    %v1085 = vrot.slane %v1074, %v1084
    %v1088 = vmul.f32 %v1051, %v1081
    %v1089 = vmul.f32 %v1053, %v1085
    %v1090 = vmul.f32 %v1057, %v1081
    %v1091 = vmul.f32 %v1059, %v1085
    %v1092 = vmul.f32 %v1063, %v1081
    %v1093 = vmul.f32 %v1065, %v1085
    %v1094 = vmul.f32 %v1069, %v1081
    %v1095 = vmul.f32 %v1071, %v1085
    %v1097 = vlaneseq
    %v1098 = vshrl.u32 %v1097, 7
    %v1099 = vsub.s32 0, %v1098
    %v1100 = vrot.slane %v1076, %v1099
    %v1101 = vlaneseq
    %v1102 = vshrl.u32 %v1101, 7
    %v1103 = vsub.s32 1, %v1102
    %v1104 = vrot.slane %v1076, %v1103
    %v1107 = vadd.f32 %v1088, %v1100
    %v1108 = vadd.f32 %v1089, %v1104
    %v1109 = vadd.f32 %v1090, %v1100
    %v1110 = vadd.f32 %v1091, %v1104
    %v1111 = vadd.f32 %v1092, %v1100
    %v1112 = vadd.f32 %v1093, %v1104
    %v1113 = vadd.f32 %v1094, %v1100
    %v1114 = vadd.f32 %v1095, %v1104
    %v1115 = vmax.f32 %v1107, 0.0
    %v1116 = vmax.f32 %v1108, 0.0
    %v1117 = vmax.f32 %v1109, 0.0
    %v1118 = vmax.f32 %v1110, 0.0
    %v1119 = vmax.f32 %v1111, 0.0
    %v1120 = vmax.f32 %v1112, 0.0
    %v1121 = vmax.f32 %v1113, 0.0
    %v1122 = vmax.f32 %v1114, 0.0
    %v1123 = vsel %vm577, %v1115, 0.0
    %v1124 = vsel %vm577, %v1116, 0.0
    %v1125 = vsel %vm578, %v1117, 0.0
    %v1126 = vsel %vm578, %v1118, 0.0
    %v1127 = vsel %vm577, %v1119, 0.0
    %v1128 = vsel %vm577, %v1120, 0.0
    %v1129 = vsel %vm578, %v1121, 0.0
    %v1130 = vsel %vm578, %v1122, 0.0
    %s1131 = scalar_lea.vmem [#allocation11], 16
    %v1132 = vld [vmem:[%s1131] ss:$8 sm:$0x3]
    %v1133 = vld [vmem:[#allocation11 + $0x11] ss:$0 sm:$0xff]
    %v1134 = vadd.f32 %v1123, %v1125
    %v1135 = vrot.slane %v1134, 4
    %v1136 = vadd.f32 %v1134, %v1135
    %v1137 = vrot.slane %v1136, 2
    %v1138 = vadd.f32 %v1136, %v1137
    %v1139 = vrot.slane %v1138, 1
    %v1140 = vadd.f32 %v1138, %v1139
    %v1141 = vadd.f32 %v1124, %v1126
    %v1142 = vrot.slane %v1141, 4
    %v1143 = vadd.f32 %v1141, %v1142
    %v1144 = vrot.slane %v1143, 2
    %v1145 = vadd.f32 %v1143, %v1144
    %v1146 = vrot.slane %v1145, 1
    %v1147 = vadd.f32 %v1145, %v1146
    %v1148 = vadd.f32 %v1127, %v1129
    %v1149 = vrot.slane %v1148, 4
    %v1150 = vadd.f32 %v1148, %v1149
    %v1151 = vrot.slane %v1150, 2
    %v1152 = vadd.f32 %v1150, %v1151
    %v1153 = vrot.slane %v1152, 1
    %v1154 = vadd.f32 %v1152, %v1153
    %v1155 = vadd.f32 %v1128, %v1130
    %v1156 = vrot.slane %v1155, 4
    %v1157 = vadd.f32 %v1155, %v1156
    %v1158 = vrot.slane %v1157, 2
    %v1159 = vadd.f32 %v1157, %v1158
    %v1160 = vrot.slane %v1159, 1
    %v1161 = vadd.f32 %v1159, %v1160
    %vm1162 = vcmask 1040384
    %v1163 = vsel %vm1162, %v1140, %v1154
    %v1164 = vsel %vm1162, %v1147, %v1161
    %v1165 = vmul.f32 %v1163, 0.125
    %v1166 = vmul.f32 %v1164, 0.125
    %v1168 = vlaneseq
    %v1169 = vshrl.u32 %v1168, 7
    %v1170 = vsub.s32 0, %v1169
    %v1171 = vrot.slane %v1132, %v1170
    %v1172 = vlaneseq
    %v1173 = vshrl.u32 %v1172, 7
    %v1174 = vsub.s32 1, %v1173
    %v1175 = vrot.slane %v1132, %v1174
    %v1178 = vmul.f32 %v1165, %v1171
    %v1179 = vmul.f32 %v1166, %v1175
    %vm1180 = vcmask 1041408
    %v1181 = vsel %vm1180, %v1178, 0.0
    %v1182 = vsel %vm1180, %v1179, 0.0
    %v1183 = vadd.f32 %v1181, %v1182
    %1184 = vadd.xlane.f32.xlu0 %v1183
    %v1185 = vpop.xlane.xlu0 %1184
    %v1186 = vadd.f32 %v1185, %v1133
    %vm1187 = vcmask 1024
    %1188 = vst.msk [vmem:[%s4] sm:$0x3] %vm1187, %v1186
    // Predicated region
    $region34: #{tpu_custom_call.1} parent=1 // pred_check
      _
    $region35: #{tpu_custom_call.1} parent=1 // pred_check_branch
      %1190 = sbr.rel (0) target = $region37
    $region36: #{tpu_custom_call.1} parent=1 // pred_region
      _
    $region37: #{tpu_custom_call.1} parent=1 // pred_fallthru
      _
    // Predicated region
    $region38: #{tpu_custom_call.1} parent=1 // pred_check
      _
    $region39: #{tpu_custom_call.1} parent=1 // pred_check_branch
      %1192 = sbr.rel (0) target = $region41
    $region40: #{tpu_custom_call.1} parent=1 // pred_region
      _
    $region41: #{tpu_custom_call.1} parent=1 // pred_fallthru
      _
    %1193 = vsyncpa [#allocation7], 1
    %1194 = vsyncpa [#allocation9], 1
    %1195 = vsyncpa [#allocation12], 1

</llo_original>
